<compile_context>
chip_gen: v5e
topology: v5e:2x2
jax: 0.10.0
libtpu: 0.0.40
codegen_flags: <defaults>
</compile_context>

<pallas_src>
import math

import jax
import jax.numpy as jnp
from jax import lax
from jax.experimental import pallas as pl
from jax.experimental.pallas import tpu as pltpu

# ----------------------------------------------------------------------------
# Fixed "trial" hyperparameters and problem sizes
# ----------------------------------------------------------------------------
BATCH = 4            # batch_size
SEQ = 8              # sequence length
INPUT_DIM = 16       # input_dim
OUTPUT_DIM = 8       # output_dim
HIDDEN = 64          # trial.suggest_int('hidden_dim', 40, 80, step=4) -> 64
EMBED = HIDDEN // 2  # input_embeded output size
NUM_LAYERS = 1       # trial.suggest_int('recurrent_layers', 1, 3) -> 1
DROPOUT_P = 0.0      # trial.suggest_float('dropout_rate', 0, 0.3, step=0.1) -> 0.0 (identity)
SCALE = 1.0 / math.sqrt(HIDDEN)


# ----------------------------------------------------------------------------
# Pallas kernel: embedding + fused bi-LSTM + self-attention + classifier
# ----------------------------------------------------------------------------
def _attention_model_kernel(
    xc_ref,      # (T*B, 2D)   rows t-major/b-minor; cols [x(t) | x(T-1-t)]
    we2_ref,     # (2D, 2E)    block-diag(we, we)
    wx2_ref,     # (2E, 8H)    fused input->gate weights (gate-interleaved cols)
    whh2_ref,    # (2H, 8H)    block-diag, gate-interleaved recurrent weights
    wa1_ref,     # (2H, 2H)    attention MLP layer 1
    wa2s_ref,    # (2H, 128)   attention MLP layer 2, transposed, *SCALE, col 0 valid
    wlab_ref,    # (4H, O)     label linear
    bias_ref,    # (8, 8H)     packed bias rows: be2 | bx2 | ba1 | ba2*SCALE | blab
    out_ref,     # (B, O)
    xg_ref,      # scratch (T*B, 8H): hoisted input->gate pre-activations
    hs_ref,      # scratch (T*B, 2H): bi-LSTM outputs in time order
):
    T, B, H, E, O = SEQ, BATCH, HIDDEN, EMBED, OUTPUT_DIM
    G = 2 * H  # fused gate-group width (128 lanes)

    # Unpack the packed bias rows (one-time, off the critical path).
    be2 = bias_ref[0:1, 0:2 * E]     # (1, 2E)
    bx2 = bias_ref[1:2, :]           # (1, 8H)
    ba1 = bias_ref[2:3, 0:2 * H]     # (1, 2H)
    ba2 = bias_ref[3:4, 0:1]         # (1, 1)   already *SCALE
    blab = bias_ref[4:5, 0:O]        # (1, O)

    # --- phase 1: batched embedding + ONE hoisted input->gate projection -----
    # (dropout p == 0.0 -> identity)
    emb = jnp.tanh(
        jnp.dot(xc_ref[...], we2_ref[...], preferred_element_type=jnp.float32)
        + be2)                                                       # (T*B, 2E)
    xg_ref[...] = (
        jnp.dot(emb, wx2_ref[...], preferred_element_type=jnp.float32) + bx2)

    # --- phase 2: fused bidirectional recurrence (one MXU op per step) -------
    # Carried state layout: lanes [0:H] = forward, [H:2H] = backward.
    h = jnp.zeros((B, 2 * H), jnp.float32)
    c = jnp.zeros((B, 2 * H), jnp.float32)
    h_steps = []
    # Static unroll (T=8): every scratch access is a static sub-window load.
    for s in range(T):
        gates = (xg_ref[s * B:(s + 1) * B, :]
                 + jnp.dot(h, whh2_ref[...],
                           preferred_element_type=jnp.float32))      # (B, 8H)
        i_g = jax.nn.sigmoid(gates[:, 0 * G:1 * G])   # [i_f | i_b] full vreg
        f_g = jax.nn.sigmoid(gates[:, 1 * G:2 * G])   # [f_f | f_b]
        g_g = jnp.tanh(gates[:, 2 * G:3 * G])         # [g_f | g_b]
        o_g = jax.nn.sigmoid(gates[:, 3 * G:4 * G])   # [o_f | o_b]
        c = f_g * c + i_g * g_g
        h = o_g * jnp.tanh(c)
        h_steps.append(h)

    # --- phase 2b: reassemble per-time rows [h_f(t) | h_b(t)] ----------------
    # step s carries h_f(s) and h_b(T-1-s); one full-vreg lane select per t,
    # stored as full 128-lane rows (no half-lane masked stores).
    lane = lax.broadcasted_iota(jnp.int32, (B, 2 * H), 1)
    is_fwd = lane < H
    rows = []
    for t in range(T):
        row_t = jnp.where(is_fwd, h_steps[t], h_steps[T - 1 - t])    # (B, 2H)
        rows.append(row_t)
        hs_ref[t * B:(t + 1) * B, :] = row_t

    # --- phase 3: batched attention MLP (MXU) + per-t softmax ----------------
    a1 = jnp.maximum(
        jnp.dot(hs_ref[...], wa1_ref[...], preferred_element_type=jnp.float32)
        + ba1, 0.0)                                                  # (T*B, 2H)
    # energies on the MXU; SCALE already folded into wa2s / ba2.
    ene = (jnp.dot(a1, wa2s_ref[...],
                   preferred_element_type=jnp.float32)[:, 0:1] + ba2)  # (T*B, 1)

    e_ts = [ene[t * B:(t + 1) * B, :] for t in range(T)]             # T x (B, 1)
    m = e_ts[0]
    for t in range(1, T):
        m = jnp.maximum(m, e_ts[t])
    p_ts = [jnp.exp(e - m) for e in e_ts]
    denom = p_ts[0]
    for t in range(1, T):
        denom = denom + p_ts[t]
    inv = 1.0 / denom    # exact reciprocal: EUP has slack, keeps ref parity

    # --- phase 4: attention-weighted + plain temporal sums, classifier -------
    final1 = rows[0] * (p_ts[0] * inv)
    final2 = rows[0]
    for t in range(1, T):
        final1 = final1 + rows[t] * (p_ts[t] * inv)
        final2 = final2 + rows[t]
    combined = jnp.concatenate([final1, final2], axis=1)             # (B, 4H)
    out_ref[...] = (
        jnp.dot(combined, wlab_ref[...], preferred_element_type=jnp.float32)
        + blab)


# ----------------------------------------------------------------------------
# Wrapper
# ----------------------------------------------------------------------------
def attention_model_forward(x, packed):
    """x: (B, T, D) batch-major float32 (same convention as the PyTorch module)."""
    B, T, D = x.shape
    # Mirror `input.permute(1, 0, 2)` and build rows [x(t) | x(T-1-t)] so the
    # backward direction's input projection comes out already time-reversed.
    x_tm = jnp.transpose(x, (1, 0, 2))                               # (T, B, D)
    x_cat = jnp.concatenate([x_tm, x_tm[::-1]], axis=-1).reshape(T * B, 2 * D)

    args = (x_cat,) + tuple(packed)
    # Single program (grid of 1); footprint < 1 MiB so everything stays
    # VMEM-resident on v5e/v6e/v7x.  With B=4 there is no independent batch
    # axis to shard across v7x's second TensorCore.
    return pl.pallas_call(
        _attention_model_kernel,
        out_shape=jax.ShapeDtypeStruct((B, OUTPUT_DIM), jnp.float32),
        in_specs=[pl.BlockSpec(memory_space=pltpu.MemorySpace.VMEM)] * len(args),
        out_specs=pl.BlockSpec(memory_space=pltpu.MemorySpace.VMEM),
        scratch_shapes=[
            pltpu.VMEM((T * B, 8 * HIDDEN), jnp.float32),  # fused input->gate pre-acts
            pltpu.VMEM((T * B, 2 * HIDDEN), jnp.float32),  # bi-LSTM outputs, time order
        ],
    )(*args)


# ----------------------------------------------------------------------------
# Deterministic parameter construction (canonical layout, matches PyTorch math)
# ----------------------------------------------------------------------------
def init_params(key):
    ks = jax.random.split(key, 18)
    H, E, D, O = HIDDEN, EMBED, INPUT_DIM, OUTPUT_DIM

    def uni(k, shape, fan_in):
        b = 1.0 / math.sqrt(fan_in)
        return jax.random.uniform(k, shape, jnp.float32, -b, b)

    # input_embeded: Linear(D, E)
    we = uni(ks[0], (D, E), D)
    be = uni(ks[1], (E,), D)

    def lstm_dir(k):
        k1, k2, k3, k4 = jax.random.split(k, 4)
        w_ih = uni(k1, (E, 4 * H), H)       # fused (in, 4H), gate order i|f|g|o
        w_hh = uni(k2, (H, 4 * H), H)
        b_ih = uni(k3, (4 * H,), H)
        b_hh = uni(k4, (4 * H,), H)
        # PyTorch init in __init__: bias[H:2H].fill_(1.0) for BOTH bias_ih and bias_hh
        b_ih = b_ih.at[H:2 * H].set(1.0)
        b_hh = b_hh.at[H:2 * H].set(1.0)
        return w_ih, w_hh, b_ih + b_hh

    wih_f, whh_f, b_f = lstm_dir(ks[2])
    wih_b, whh_b, b_b = lstm_dir(ks[3])

    # self_attention: Linear(2H, 2H) -> ReLU -> Linear(2H, 1)
    wa1 = uni(ks[4], (2 * H, 2 * H), 2 * H)
    ba1 = uni(ks[5], (2 * H,), 2 * H)
    wa2 = uni(ks[6], (1, 2 * H), 2 * H)     # torch weight shape (1, 2H)
    ba2 = uni(ks[7], (1,), 2 * H)

    # label: Linear(4H, O).  (output_linear exists in __init__ but is unused.)
    wlab = uni(ks[8], (4 * H, O), 4 * H)
    blab = uni(ks[9], (O,), 4 * H)

    return dict(we=we, be=be, wih_f=wih_f, whh_f=whh_f, b_f=b_f,
                wih_b=wih_b, whh_b=whh_b, b_b=b_b,
                wa1=wa1, ba1=ba1, wa2=wa2, ba2=ba2, wlab=wlab, blab=blab)


def pack_params(p):
    """Build the fused / block-diagonal kernel operands (host-side, one-time)."""
    H, E, D, O = HIDDEN, EMBED, INPUT_DIM, OUTPUT_DIM

    # Embedding applied to both the forward and the time-reversed input copy.
    we2 = jnp.zeros((2 * D, 2 * E), jnp.float32)
    we2 = we2.at[:D, :E].set(p['we']).at[D:, E:].set(p['we'])
    be2 = jnp.concatenate([p['be'], p['be']])                       # (2E,)

    # Gate-interleaved fused columns: group g occupies lanes [g*2H:(g+1)*2H],
    # with [0:H] = forward and [H:2H] = backward inside each group.
    wx2 = jnp.zeros((2 * E, 8 * H), jnp.float32)
    whh2 = jnp.zeros((2 * H, 8 * H), jnp.float32)
    bx2 = jnp.zeros((8 * H,), jnp.float32)
    for g in range(4):
        c0 = g * 2 * H
        sl = slice(g * H, (g + 1) * H)
        wx2 = wx2.at[:E, c0:c0 + H].set(p['wih_f'][:, sl])
        wx2 = wx2.at[E:, c0 + H:c0 + 2 * H].set(p['wih_b'][:, sl])
        whh2 = whh2.at[:H, c0:c0 + H].set(p['whh_f'][:, sl])
        whh2 = whh2.at[H:, c0 + H:c0 + 2 * H].set(p['whh_b'][:, sl])
        bx2 = bx2.at[c0:c0 + H].set(p['b_f'][sl])
        bx2 = bx2.at[c0 + H:c0 + 2 * H].set(p['b_b'][sl])

    # Attention layer 2 as an MXU matvec: transpose, fold SCALE, pad to 128 lanes.
    wa2s = jnp.zeros((2 * H, 128), jnp.float32).at[:, 0].set(p['wa2'][0] * SCALE)
    ba2s = p['ba2'][0] * SCALE

    # Pack every small bias row into a single operand (one DMA instead of six).
    biases = jnp.zeros((8, 8 * H), jnp.float32)
    biases = biases.at[0, :2 * E].set(be2)
    biases = biases.at[1, :].set(bx2)
    biases = biases.at[2, :2 * H].set(p['ba1'])
    biases = biases.at[3, 0].set(ba2s)
    biases = biases.at[4, :O].set(p['blab'])

    return (we2, wx2, whh2, p['wa1'], wa2s, p['wlab'], biases)


# ----------------------------------------------------------------------------
# Pure-JAX reference (mirrors the PyTorch forward) for a correctness check
# ----------------------------------------------------------------------------
def reference_forward(x, p):
    H = HIDDEN
    B = x.shape[0]

    emb = jnp.tanh(x @ p['we'] + p['be'])          # (B, T, E)
    emb_t = jnp.transpose(emb, (1, 0, 2))          # (T, B, E)

    def make_step(wih, whh, b):
        def step(carry, x_t):
            h, c = carry
            gates = x_t @ wih + h @ whh + b        # (B, 4H)
            i = jax.nn.sigmoid(gates[:, 0:H])
            f = jax.nn.sigmoid(gates[:, H:2 * H])
            g = jnp.tanh(gates[:, 2 * H:3 * H])
            o = jax.nn.sigmoid(gates[:, 3 * H:4 * H])
            c = f * c + i * g
            h = o * jnp.tanh(c)
            return (h, c), h
        return step

    h0 = jnp.zeros((B, H), jnp.float32)
    _, hf = lax.scan(make_step(p['wih_f'], p['whh_f'], p['b_f']), (h0, h0), emb_t)
    _, hb_r = lax.scan(make_step(p['wih_b'], p['whh_b'], p['b_b']), (h0, h0), emb_t[::-1])
    hb = hb_r[::-1]
    out_seq = jnp.concatenate([hf, hb], axis=-1)       # (T, B, 2H)
    out_bt = jnp.transpose(out_seq, (1, 0, 2))         # (B, T, 2H)

    a1 = jax.nn.relu(out_bt @ p['wa1'] + p['ba1'])
    attn_ene = (jnp.einsum('bth,h->bt', a1, p['wa2'][0]) + p['ba2'][0]) * SCALE
    attns = jax.nn.softmax(attn_ene, axis=1)[:, :, None]
    final1 = (out_bt * attns).sum(axis=1)
    final2 = out_bt.sum(axis=1)
    combined = jnp.concatenate([final1, final2], axis=1)
    return combined @ p['wlab'] + p['blab']


if __name__ == "__main__":
    key = jax.random.PRNGKey(0)
    k_x, k_p = jax.random.split(key)
    x = jax.random.normal(k_x, (BATCH, SEQ, INPUT_DIM), jnp.float32)
    params = init_params(k_p)
    packed = pack_params(params)

    logits = jax.block_until_ready(attention_model_forward(x, packed))
    ref = jax.block_until_ready(reference_forward(x, params))

    assert logits.shape == (BATCH, OUTPUT_DIM)
    # Exact softmax reciprocal now -> tolerance tightened vs. the previous 5e-3.
    assert jnp.allclose(logits, ref, rtol=2e-3, atol=2e-3), (
        f"max abs err {jnp.max(jnp.abs(logits - ref))}")
    print("KERNEL_OK")
</pallas_src>

<mosaic_0001>
module attributes {stable_mosaic.version = 11 : i64} {
  func.func @_attention_model_kernel(%arg0: memref<32x32xf32, #tpu.memory_space<vmem>>, %arg1: memref<32x64xf32, #tpu.memory_space<vmem>>, %arg2: memref<64x512xf32, #tpu.memory_space<vmem>>, %arg3: memref<128x512xf32, #tpu.memory_space<vmem>>, %arg4: memref<128x128xf32, #tpu.memory_space<vmem>>, %arg5: memref<128x128xf32, #tpu.memory_space<vmem>>, %arg6: memref<256x8xf32, #tpu.memory_space<vmem>>, %arg7: memref<8x512xf32, #tpu.memory_space<vmem>>, %arg8: memref<4x8xf32, #tpu.memory_space<vmem>>, %arg9: memref<32x512xf32, #tpu.memory_space<vmem>>, %arg10: memref<32x128xf32, #tpu.memory_space<vmem>>) attributes {dimension_semantics = [], scalar_prefetch = 0 : i64, scratch_operands = 2 : i64, tpu.core_type = #tpu.core_type<tc>} {
    %c0 = arith.constant 0 : index
    %c0_0 = arith.constant 0 : index
    %0 = vector.load %arg7[%c0, %c0_0] : memref<8x512xf32, #tpu.memory_space<vmem>>, vector<1x64xf32>
    %c1 = arith.constant 1 : index
    %c0_1 = arith.constant 0 : index
    %1 = vector.load %arg7[%c1, %c0_1] : memref<8x512xf32, #tpu.memory_space<vmem>>, vector<1x512xf32>
    %c2 = arith.constant 2 : index
    %c0_2 = arith.constant 0 : index
    %2 = vector.load %arg7[%c2, %c0_2] : memref<8x512xf32, #tpu.memory_space<vmem>>, vector<1x128xf32>
    %c3 = arith.constant 3 : index
    %c0_3 = arith.constant 0 : index
    %3 = vector.load %arg7[%c3, %c0_3] : memref<8x512xf32, #tpu.memory_space<vmem>>, vector<1x1xf32>
    %c4 = arith.constant 4 : index
    %c0_4 = arith.constant 0 : index
    %4 = vector.load %arg7[%c4, %c0_4] : memref<8x512xf32, #tpu.memory_space<vmem>>, vector<1x8xf32>
    %c0_5 = arith.constant 0 : index
    %c0_6 = arith.constant 0 : index
    %5 = vector.load %arg0[%c0_5, %c0_6] : memref<32x32xf32, #tpu.memory_space<vmem>>, vector<32x32xf32>
    %c0_7 = arith.constant 0 : index
    %c0_8 = arith.constant 0 : index
    %6 = vector.load %arg1[%c0_7, %c0_8] : memref<32x64xf32, #tpu.memory_space<vmem>>, vector<32x64xf32>
    %cst = arith.constant dense<0.000000e+00> : vector<32x64xf32>
    %7 = tpu.matmul %5, %6, %cst {dimension_numbers = #tpu.dot_dimension_numbers<[1], [0], [0], [1], [0, 0, 1, 1], [], []>} : vector<32x32xf32>, vector<32x64xf32>, vector<32x64xf32> -> vector<32x64xf32>
    %8 = vector.broadcast %0 : vector<1x64xf32> to vector<32x64xf32>
    %9 = arith.addf %7, %8 : vector<32x64xf32>
    %10 = math.tanh %9 : vector<32x64xf32>
    %c0_9 = arith.constant 0 : index
    %c0_10 = arith.constant 0 : index
    %11 = vector.load %arg2[%c0_9, %c0_10] : memref<64x512xf32, #tpu.memory_space<vmem>>, vector<64x512xf32>
    %cst_11 = arith.constant dense<0.000000e+00> : vector<32x512xf32>
    %12 = tpu.matmul %10, %11, %cst_11 {dimension_numbers = #tpu.dot_dimension_numbers<[1], [0], [0], [1], [0, 0, 1, 1], [], []>} : vector<32x64xf32>, vector<64x512xf32>, vector<32x512xf32> -> vector<32x512xf32>
    %13 = vector.broadcast %1 : vector<1x512xf32> to vector<32x512xf32>
    %14 = arith.addf %12, %13 : vector<32x512xf32>
    %c0_12 = arith.constant 0 : index
    %c0_13 = arith.constant 0 : index
    %15 = vector.load %arg9[%c0_12, %c0_13] : memref<32x512xf32, #tpu.memory_space<vmem>>, vector<32x512xf32>
    tpu.vector_store %arg9[%c0_12, %c0_13], %14 {strides = array<i32>} : memref<32x512xf32, #tpu.memory_space<vmem>>, vector<32x512xf32>,
    %cst_14 = arith.constant 0.000000e+00 : f32
    %16 = vector.broadcast %cst_14 : f32 to vector<4x128xf32>
    %cst_15 = arith.constant 0.000000e+00 : f32
    %17 = vector.broadcast %cst_15 : f32 to vector<4x128xf32>
    %c0_16 = arith.constant 0 : index
    %c0_17 = arith.constant 0 : index
    %18 = vector.load %arg9[%c0_16, %c0_17] : memref<32x512xf32, #tpu.memory_space<vmem>>, vector<4x512xf32>
    %c0_18 = arith.constant 0 : index
    %c0_19 = arith.constant 0 : index
    %19 = vector.load %arg3[%c0_18, %c0_19] : memref<128x512xf32, #tpu.memory_space<vmem>>, vector<128x512xf32>
    %cst_20 = arith.constant dense<0.000000e+00> : vector<4x512xf32>
    %20 = tpu.matmul %16, %19, %cst_20 {dimension_numbers = #tpu.dot_dimension_numbers<[1], [0], [0], [1], [0, 0, 1, 1], [], []>} : vector<4x128xf32>, vector<128x512xf32>, vector<4x512xf32> -> vector<4x512xf32>
    %21 = arith.addf %18, %20 : vector<4x512xf32>
    %22 = vector.extract_strided_slice %21 {offsets = [0, 0], sizes = [4, 128], strides = [1, 1]} : vector<4x512xf32> to vector<4x128xf32>
    %23 = arith.negf %22 : vector<4x128xf32>
    %24 = math.exp %23 : vector<4x128xf32>
    %cst_21 = arith.constant 1.000000e+00 : f32
    %25 = vector.broadcast %cst_21 : f32 to vector<4x128xf32>
    %26 = arith.addf %25, %24 : vector<4x128xf32>
    %27 = arith.divf %25, %26 : vector<4x128xf32>
    %28 = vector.extract_strided_slice %21 {offsets = [0, 128], sizes = [4, 128], strides = [1, 1]} : vector<4x512xf32> to vector<4x128xf32>
    %29 = arith.negf %28 : vector<4x128xf32>
    %30 = math.exp %29 : vector<4x128xf32>
    %cst_22 = arith.constant 1.000000e+00 : f32
    %31 = vector.broadcast %cst_22 : f32 to vector<4x128xf32>
    %32 = arith.addf %31, %30 : vector<4x128xf32>
    %33 = arith.divf %31, %32 : vector<4x128xf32>
    %34 = vector.extract_strided_slice %21 {offsets = [0, 256], sizes = [4, 128], strides = [1, 1]} : vector<4x512xf32> to vector<4x128xf32>
    %35 = math.tanh %34 : vector<4x128xf32>
    %36 = vector.extract_strided_slice %21 {offsets = [0, 384], sizes = [4, 128], strides = [1, 1]} : vector<4x512xf32> to vector<4x128xf32>
    %37 = arith.negf %36 : vector<4x128xf32>
    %38 = math.exp %37 : vector<4x128xf32>
    %cst_23 = arith.constant 1.000000e+00 : f32
    %39 = vector.broadcast %cst_23 : f32 to vector<4x128xf32>
    %40 = arith.addf %39, %38 : vector<4x128xf32>
    %41 = arith.divf %39, %40 : vector<4x128xf32>
    %42 = arith.mulf %33, %17 : vector<4x128xf32>
    %43 = arith.mulf %27, %35 : vector<4x128xf32>
    %44 = arith.addf %42, %43 : vector<4x128xf32>
    %45 = math.tanh %44 : vector<4x128xf32>
    %46 = arith.mulf %41, %45 : vector<4x128xf32>
    %c4_24 = arith.constant 4 : index
    %c0_25 = arith.constant 0 : index
    %47 = vector.load %arg9[%c4_24, %c0_25] : memref<32x512xf32, #tpu.memory_space<vmem>>, vector<4x512xf32>
    %c0_26 = arith.constant 0 : index
    %c0_27 = arith.constant 0 : index
    %48 = vector.load %arg3[%c0_26, %c0_27] : memref<128x512xf32, #tpu.memory_space<vmem>>, vector<128x512xf32>
    %cst_28 = arith.constant dense<0.000000e+00> : vector<4x512xf32>
    %49 = tpu.matmul %46, %48, %cst_28 {dimension_numbers = #tpu.dot_dimension_numbers<[1], [0], [0], [1], [0, 0, 1, 1], [], []>} : vector<4x128xf32>, vector<128x512xf32>, vector<4x512xf32> -> vector<4x512xf32>
    %50 = arith.addf %47, %49 : vector<4x512xf32>
    %51 = vector.extract_strided_slice %50 {offsets = [0, 0], sizes = [4, 128], strides = [1, 1]} : vector<4x512xf32> to vector<4x128xf32>
    %52 = arith.negf %51 : vector<4x128xf32>
    %53 = math.exp %52 : vector<4x128xf32>
    %cst_29 = arith.constant 1.000000e+00 : f32
    %54 = vector.broadcast %cst_29 : f32 to vector<4x128xf32>
    %55 = arith.addf %54, %53 : vector<4x128xf32>
    %56 = arith.divf %54, %55 : vector<4x128xf32>
    %57 = vector.extract_strided_slice %50 {offsets = [0, 128], sizes = [4, 128], strides = [1, 1]} : vector<4x512xf32> to vector<4x128xf32>
    %58 = arith.negf %57 : vector<4x128xf32>
    %59 = math.exp %58 : vector<4x128xf32>
    %cst_30 = arith.constant 1.000000e+00 : f32
    %60 = vector.broadcast %cst_30 : f32 to vector<4x128xf32>
    %61 = arith.addf %60, %59 : vector<4x128xf32>
    %62 = arith.divf %60, %61 : vector<4x128xf32>
    %63 = vector.extract_strided_slice %50 {offsets = [0, 256], sizes = [4, 128], strides = [1, 1]} : vector<4x512xf32> to vector<4x128xf32>
    %64 = math.tanh %63 : vector<4x128xf32>
    %65 = vector.extract_strided_slice %50 {offsets = [0, 384], sizes = [4, 128], strides = [1, 1]} : vector<4x512xf32> to vector<4x128xf32>
    %66 = arith.negf %65 : vector<4x128xf32>
    %67 = math.exp %66 : vector<4x128xf32>
    %cst_31 = arith.constant 1.000000e+00 : f32
    %68 = vector.broadcast %cst_31 : f32 to vector<4x128xf32>
    %69 = arith.addf %68, %67 : vector<4x128xf32>
    %70 = arith.divf %68, %69 : vector<4x128xf32>
    %71 = arith.mulf %62, %44 : vector<4x128xf32>
    %72 = arith.mulf %56, %64 : vector<4x128xf32>
    %73 = arith.addf %71, %72 : vector<4x128xf32>
    %74 = math.tanh %73 : vector<4x128xf32>
    %75 = arith.mulf %70, %74 : vector<4x128xf32>
    %c8 = arith.constant 8 : index
    %c0_32 = arith.constant 0 : index
    %76 = vector.load %arg9[%c8, %c0_32] : memref<32x512xf32, #tpu.memory_space<vmem>>, vector<4x512xf32>
    %c0_33 = arith.constant 0 : index
    %c0_34 = arith.constant 0 : index
    %77 = vector.load %arg3[%c0_33, %c0_34] : memref<128x512xf32, #tpu.memory_space<vmem>>, vector<128x512xf32>
    %cst_35 = arith.constant dense<0.000000e+00> : vector<4x512xf32>
    %78 = tpu.matmul %75, %77, %cst_35 {dimension_numbers = #tpu.dot_dimension_numbers<[1], [0], [0], [1], [0, 0, 1, 1], [], []>} : vector<4x128xf32>, vector<128x512xf32>, vector<4x512xf32> -> vector<4x512xf32>
    %79 = arith.addf %76, %78 : vector<4x512xf32>
    %80 = vector.extract_strided_slice %79 {offsets = [0, 0], sizes = [4, 128], strides = [1, 1]} : vector<4x512xf32> to vector<4x128xf32>
    %81 = arith.negf %80 : vector<4x128xf32>
    %82 = math.exp %81 : vector<4x128xf32>
    %cst_36 = arith.constant 1.000000e+00 : f32
    %83 = vector.broadcast %cst_36 : f32 to vector<4x128xf32>
    %84 = arith.addf %83, %82 : vector<4x128xf32>
    %85 = arith.divf %83, %84 : vector<4x128xf32>
    %86 = vector.extract_strided_slice %79 {offsets = [0, 128], sizes = [4, 128], strides = [1, 1]} : vector<4x512xf32> to vector<4x128xf32>
    %87 = arith.negf %86 : vector<4x128xf32>
    %88 = math.exp %87 : vector<4x128xf32>
    %cst_37 = arith.constant 1.000000e+00 : f32
    %89 = vector.broadcast %cst_37 : f32 to vector<4x128xf32>
    %90 = arith.addf %89, %88 : vector<4x128xf32>
    %91 = arith.divf %89, %90 : vector<4x128xf32>
    %92 = vector.extract_strided_slice %79 {offsets = [0, 256], sizes = [4, 128], strides = [1, 1]} : vector<4x512xf32> to vector<4x128xf32>
    %93 = math.tanh %92 : vector<4x128xf32>
    %94 = vector.extract_strided_slice %79 {offsets = [0, 384], sizes = [4, 128], strides = [1, 1]} : vector<4x512xf32> to vector<4x128xf32>
    %95 = arith.negf %94 : vector<4x128xf32>
    %96 = math.exp %95 : vector<4x128xf32>
    %cst_38 = arith.constant 1.000000e+00 : f32
    %97 = vector.broadcast %cst_38 : f32 to vector<4x128xf32>
    %98 = arith.addf %97, %96 : vector<4x128xf32>
    %99 = arith.divf %97, %98 : vector<4x128xf32>
    %100 = arith.mulf %91, %73 : vector<4x128xf32>
    %101 = arith.mulf %85, %93 : vector<4x128xf32>
    %102 = arith.addf %100, %101 : vector<4x128xf32>
    %103 = math.tanh %102 : vector<4x128xf32>
    %104 = arith.mulf %99, %103 : vector<4x128xf32>
    %c12 = arith.constant 12 : index
    %c0_39 = arith.constant 0 : index
    %105 = vector.load %arg9[%c12, %c0_39] : memref<32x512xf32, #tpu.memory_space<vmem>>, vector<4x512xf32>
    %c0_40 = arith.constant 0 : index
    %c0_41 = arith.constant 0 : index
    %106 = vector.load %arg3[%c0_40, %c0_41] : memref<128x512xf32, #tpu.memory_space<vmem>>, vector<128x512xf32>
    %cst_42 = arith.constant dense<0.000000e+00> : vector<4x512xf32>
    %107 = tpu.matmul %104, %106, %cst_42 {dimension_numbers = #tpu.dot_dimension_numbers<[1], [0], [0], [1], [0, 0, 1, 1], [], []>} : vector<4x128xf32>, vector<128x512xf32>, vector<4x512xf32> -> vector<4x512xf32>
    %108 = arith.addf %105, %107 : vector<4x512xf32>
    %109 = vector.extract_strided_slice %108 {offsets = [0, 0], sizes = [4, 128], strides = [1, 1]} : vector<4x512xf32> to vector<4x128xf32>
    %110 = arith.negf %109 : vector<4x128xf32>
    %111 = math.exp %110 : vector<4x128xf32>
    %cst_43 = arith.constant 1.000000e+00 : f32
    %112 = vector.broadcast %cst_43 : f32 to vector<4x128xf32>
    %113 = arith.addf %112, %111 : vector<4x128xf32>
    %114 = arith.divf %112, %113 : vector<4x128xf32>
    %115 = vector.extract_strided_slice %108 {offsets = [0, 128], sizes = [4, 128], strides = [1, 1]} : vector<4x512xf32> to vector<4x128xf32>
    %116 = arith.negf %115 : vector<4x128xf32>
    %117 = math.exp %116 : vector<4x128xf32>
    %cst_44 = arith.constant 1.000000e+00 : f32
    %118 = vector.broadcast %cst_44 : f32 to vector<4x128xf32>
    %119 = arith.addf %118, %117 : vector<4x128xf32>
    %120 = arith.divf %118, %119 : vector<4x128xf32>
    %121 = vector.extract_strided_slice %108 {offsets = [0, 256], sizes = [4, 128], strides = [1, 1]} : vector<4x512xf32> to vector<4x128xf32>
    %122 = math.tanh %121 : vector<4x128xf32>
    %123 = vector.extract_strided_slice %108 {offsets = [0, 384], sizes = [4, 128], strides = [1, 1]} : vector<4x512xf32> to vector<4x128xf32>
    %124 = arith.negf %123 : vector<4x128xf32>
    %125 = math.exp %124 : vector<4x128xf32>
    %cst_45 = arith.constant 1.000000e+00 : f32
    %126 = vector.broadcast %cst_45 : f32 to vector<4x128xf32>
    %127 = arith.addf %126, %125 : vector<4x128xf32>
    %128 = arith.divf %126, %127 : vector<4x128xf32>
    %129 = arith.mulf %120, %102 : vector<4x128xf32>
    %130 = arith.mulf %114, %122 : vector<4x128xf32>
    %131 = arith.addf %129, %130 : vector<4x128xf32>
    %132 = math.tanh %131 : vector<4x128xf32>
    %133 = arith.mulf %128, %132 : vector<4x128xf32>
    %c16 = arith.constant 16 : index
    %c0_46 = arith.constant 0 : index
    %134 = vector.load %arg9[%c16, %c0_46] : memref<32x512xf32, #tpu.memory_space<vmem>>, vector<4x512xf32>
    %c0_47 = arith.constant 0 : index
    %c0_48 = arith.constant 0 : index
    %135 = vector.load %arg3[%c0_47, %c0_48] : memref<128x512xf32, #tpu.memory_space<vmem>>, vector<128x512xf32>
    %cst_49 = arith.constant dense<0.000000e+00> : vector<4x512xf32>
    %136 = tpu.matmul %133, %135, %cst_49 {dimension_numbers = #tpu.dot_dimension_numbers<[1], [0], [0], [1], [0, 0, 1, 1], [], []>} : vector<4x128xf32>, vector<128x512xf32>, vector<4x512xf32> -> vector<4x512xf32>
    %137 = arith.addf %134, %136 : vector<4x512xf32>
    %138 = vector.extract_strided_slice %137 {offsets = [0, 0], sizes = [4, 128], strides = [1, 1]} : vector<4x512xf32> to vector<4x128xf32>
    %139 = arith.negf %138 : vector<4x128xf32>
    %140 = math.exp %139 : vector<4x128xf32>
    %cst_50 = arith.constant 1.000000e+00 : f32
    %141 = vector.broadcast %cst_50 : f32 to vector<4x128xf32>
    %142 = arith.addf %141, %140 : vector<4x128xf32>
    %143 = arith.divf %141, %142 : vector<4x128xf32>
    %144 = vector.extract_strided_slice %137 {offsets = [0, 128], sizes = [4, 128], strides = [1, 1]} : vector<4x512xf32> to vector<4x128xf32>
    %145 = arith.negf %144 : vector<4x128xf32>
    %146 = math.exp %145 : vector<4x128xf32>
    %cst_51 = arith.constant 1.000000e+00 : f32
    %147 = vector.broadcast %cst_51 : f32 to vector<4x128xf32>
    %148 = arith.addf %147, %146 : vector<4x128xf32>
    %149 = arith.divf %147, %148 : vector<4x128xf32>
    %150 = vector.extract_strided_slice %137 {offsets = [0, 256], sizes = [4, 128], strides = [1, 1]} : vector<4x512xf32> to vector<4x128xf32>
    %151 = math.tanh %150 : vector<4x128xf32>
    %152 = vector.extract_strided_slice %137 {offsets = [0, 384], sizes = [4, 128], strides = [1, 1]} : vector<4x512xf32> to vector<4x128xf32>
    %153 = arith.negf %152 : vector<4x128xf32>
    %154 = math.exp %153 : vector<4x128xf32>
    %cst_52 = arith.constant 1.000000e+00 : f32
    %155 = vector.broadcast %cst_52 : f32 to vector<4x128xf32>
    %156 = arith.addf %155, %154 : vector<4x128xf32>
    %157 = arith.divf %155, %156 : vector<4x128xf32>
    %158 = arith.mulf %149, %131 : vector<4x128xf32>
    %159 = arith.mulf %143, %151 : vector<4x128xf32>
    %160 = arith.addf %158, %159 : vector<4x128xf32>
    %161 = math.tanh %160 : vector<4x128xf32>
    %162 = arith.mulf %157, %161 : vector<4x128xf32>
    %c20 = arith.constant 20 : index
    %c0_53 = arith.constant 0 : index
    %163 = vector.load %arg9[%c20, %c0_53] : memref<32x512xf32, #tpu.memory_space<vmem>>, vector<4x512xf32>
    %c0_54 = arith.constant 0 : index
    %c0_55 = arith.constant 0 : index
    %164 = vector.load %arg3[%c0_54, %c0_55] : memref<128x512xf32, #tpu.memory_space<vmem>>, vector<128x512xf32>
    %cst_56 = arith.constant dense<0.000000e+00> : vector<4x512xf32>
    %165 = tpu.matmul %162, %164, %cst_56 {dimension_numbers = #tpu.dot_dimension_numbers<[1], [0], [0], [1], [0, 0, 1, 1], [], []>} : vector<4x128xf32>, vector<128x512xf32>, vector<4x512xf32> -> vector<4x512xf32>
    %166 = arith.addf %163, %165 : vector<4x512xf32>
    %167 = vector.extract_strided_slice %166 {offsets = [0, 0], sizes = [4, 128], strides = [1, 1]} : vector<4x512xf32> to vector<4x128xf32>
    %168 = arith.negf %167 : vector<4x128xf32>
    %169 = math.exp %168 : vector<4x128xf32>
    %cst_57 = arith.constant 1.000000e+00 : f32
    %170 = vector.broadcast %cst_57 : f32 to vector<4x128xf32>
    %171 = arith.addf %170, %169 : vector<4x128xf32>
    %172 = arith.divf %170, %171 : vector<4x128xf32>
    %173 = vector.extract_strided_slice %166 {offsets = [0, 128], sizes = [4, 128], strides = [1, 1]} : vector<4x512xf32> to vector<4x128xf32>
    %174 = arith.negf %173 : vector<4x128xf32>
    %175 = math.exp %174 : vector<4x128xf32>
    %cst_58 = arith.constant 1.000000e+00 : f32
    %176 = vector.broadcast %cst_58 : f32 to vector<4x128xf32>
    %177 = arith.addf %176, %175 : vector<4x128xf32>
    %178 = arith.divf %176, %177 : vector<4x128xf32>
    %179 = vector.extract_strided_slice %166 {offsets = [0, 256], sizes = [4, 128], strides = [1, 1]} : vector<4x512xf32> to vector<4x128xf32>
    %180 = math.tanh %179 : vector<4x128xf32>
    %181 = vector.extract_strided_slice %166 {offsets = [0, 384], sizes = [4, 128], strides = [1, 1]} : vector<4x512xf32> to vector<4x128xf32>
    %182 = arith.negf %181 : vector<4x128xf32>
    %183 = math.exp %182 : vector<4x128xf32>
    %cst_59 = arith.constant 1.000000e+00 : f32
    %184 = vector.broadcast %cst_59 : f32 to vector<4x128xf32>
    %185 = arith.addf %184, %183 : vector<4x128xf32>
    %186 = arith.divf %184, %185 : vector<4x128xf32>
    %187 = arith.mulf %178, %160 : vector<4x128xf32>
    %188 = arith.mulf %172, %180 : vector<4x128xf32>
    %189 = arith.addf %187, %188 : vector<4x128xf32>
    %190 = math.tanh %189 : vector<4x128xf32>
    %191 = arith.mulf %186, %190 : vector<4x128xf32>
    %c24 = arith.constant 24 : index
    %c0_60 = arith.constant 0 : index
    %192 = vector.load %arg9[%c24, %c0_60] : memref<32x512xf32, #tpu.memory_space<vmem>>, vector<4x512xf32>
    %c0_61 = arith.constant 0 : index
    %c0_62 = arith.constant 0 : index
    %193 = vector.load %arg3[%c0_61, %c0_62] : memref<128x512xf32, #tpu.memory_space<vmem>>, vector<128x512xf32>
    %cst_63 = arith.constant dense<0.000000e+00> : vector<4x512xf32>
    %194 = tpu.matmul %191, %193, %cst_63 {dimension_numbers = #tpu.dot_dimension_numbers<[1], [0], [0], [1], [0, 0, 1, 1], [], []>} : vector<4x128xf32>, vector<128x512xf32>, vector<4x512xf32> -> vector<4x512xf32>
    %195 = arith.addf %192, %194 : vector<4x512xf32>
    %196 = vector.extract_strided_slice %195 {offsets = [0, 0], sizes = [4, 128], strides = [1, 1]} : vector<4x512xf32> to vector<4x128xf32>
    %197 = arith.negf %196 : vector<4x128xf32>
    %198 = math.exp %197 : vector<4x128xf32>
    %cst_64 = arith.constant 1.000000e+00 : f32
    %199 = vector.broadcast %cst_64 : f32 to vector<4x128xf32>
    %200 = arith.addf %199, %198 : vector<4x128xf32>
    %201 = arith.divf %199, %200 : vector<4x128xf32>
    %202 = vector.extract_strided_slice %195 {offsets = [0, 128], sizes = [4, 128], strides = [1, 1]} : vector<4x512xf32> to vector<4x128xf32>
    %203 = arith.negf %202 : vector<4x128xf32>
    %204 = math.exp %203 : vector<4x128xf32>
    %cst_65 = arith.constant 1.000000e+00 : f32
    %205 = vector.broadcast %cst_65 : f32 to vector<4x128xf32>
    %206 = arith.addf %205, %204 : vector<4x128xf32>
    %207 = arith.divf %205, %206 : vector<4x128xf32>
    %208 = vector.extract_strided_slice %195 {offsets = [0, 256], sizes = [4, 128], strides = [1, 1]} : vector<4x512xf32> to vector<4x128xf32>
    %209 = math.tanh %208 : vector<4x128xf32>
    %210 = vector.extract_strided_slice %195 {offsets = [0, 384], sizes = [4, 128], strides = [1, 1]} : vector<4x512xf32> to vector<4x128xf32>
    %211 = arith.negf %210 : vector<4x128xf32>
    %212 = math.exp %211 : vector<4x128xf32>
    %cst_66 = arith.constant 1.000000e+00 : f32
    %213 = vector.broadcast %cst_66 : f32 to vector<4x128xf32>
    %214 = arith.addf %213, %212 : vector<4x128xf32>
    %215 = arith.divf %213, %214 : vector<4x128xf32>
    %216 = arith.mulf %207, %189 : vector<4x128xf32>
    %217 = arith.mulf %201, %209 : vector<4x128xf32>
    %218 = arith.addf %216, %217 : vector<4x128xf32>
    %219 = math.tanh %218 : vector<4x128xf32>
    %220 = arith.mulf %215, %219 : vector<4x128xf32>
    %c28 = arith.constant 28 : index
    %c0_67 = arith.constant 0 : index
    %221 = vector.load %arg9[%c28, %c0_67] : memref<32x512xf32, #tpu.memory_space<vmem>>, vector<4x512xf32>
    %c0_68 = arith.constant 0 : index
    %c0_69 = arith.constant 0 : index
    %222 = vector.load %arg3[%c0_68, %c0_69] : memref<128x512xf32, #tpu.memory_space<vmem>>, vector<128x512xf32>
    %cst_70 = arith.constant dense<0.000000e+00> : vector<4x512xf32>
    %223 = tpu.matmul %220, %222, %cst_70 {dimension_numbers = #tpu.dot_dimension_numbers<[1], [0], [0], [1], [0, 0, 1, 1], [], []>} : vector<4x128xf32>, vector<128x512xf32>, vector<4x512xf32> -> vector<4x512xf32>
    %224 = arith.addf %221, %223 : vector<4x512xf32>
    %225 = vector.extract_strided_slice %224 {offsets = [0, 0], sizes = [4, 128], strides = [1, 1]} : vector<4x512xf32> to vector<4x128xf32>
    %226 = arith.negf %225 : vector<4x128xf32>
    %227 = math.exp %226 : vector<4x128xf32>
    %cst_71 = arith.constant 1.000000e+00 : f32
    %228 = vector.broadcast %cst_71 : f32 to vector<4x128xf32>
    %229 = arith.addf %228, %227 : vector<4x128xf32>
    %230 = arith.divf %228, %229 : vector<4x128xf32>
    %231 = vector.extract_strided_slice %224 {offsets = [0, 128], sizes = [4, 128], strides = [1, 1]} : vector<4x512xf32> to vector<4x128xf32>
    %232 = arith.negf %231 : vector<4x128xf32>
    %233 = math.exp %232 : vector<4x128xf32>
    %cst_72 = arith.constant 1.000000e+00 : f32
    %234 = vector.broadcast %cst_72 : f32 to vector<4x128xf32>
    %235 = arith.addf %234, %233 : vector<4x128xf32>
    %236 = arith.divf %234, %235 : vector<4x128xf32>
    %237 = vector.extract_strided_slice %224 {offsets = [0, 256], sizes = [4, 128], strides = [1, 1]} : vector<4x512xf32> to vector<4x128xf32>
    %238 = math.tanh %237 : vector<4x128xf32>
    %239 = vector.extract_strided_slice %224 {offsets = [0, 384], sizes = [4, 128], strides = [1, 1]} : vector<4x512xf32> to vector<4x128xf32>
    %240 = arith.negf %239 : vector<4x128xf32>
    %241 = math.exp %240 : vector<4x128xf32>
    %cst_73 = arith.constant 1.000000e+00 : f32
    %242 = vector.broadcast %cst_73 : f32 to vector<4x128xf32>
    %243 = arith.addf %242, %241 : vector<4x128xf32>
    %244 = arith.divf %242, %243 : vector<4x128xf32>
    %245 = arith.mulf %236, %218 : vector<4x128xf32>
    %246 = arith.mulf %230, %238 : vector<4x128xf32>
    %247 = arith.addf %245, %246 : vector<4x128xf32>
    %248 = math.tanh %247 : vector<4x128xf32>
    %249 = arith.mulf %244, %248 : vector<4x128xf32>
    %250 = tpu.iota {dimensions = array<i32: 1>} : vector<4x128xi32>
    %c64_i32 = arith.constant 64 : i32
    %251 = vector.broadcast %c64_i32 : i32 to vector<4x128xi32>
    %252 = arith.cmpi slt, %250, %251 : vector<4x128xi32>
    %253 = arith.select %252, %46, %249 : vector<4x128xi1>, vector<4x128xf32>
    %c0_74 = arith.constant 0 : index
    %c0_75 = arith.constant 0 : index
    %254 = vector.load %arg10[%c0_74, %c0_75] : memref<32x128xf32, #tpu.memory_space<vmem>>, vector<4x128xf32>
    tpu.vector_store %arg10[%c0_74, %c0_75], %253 {strides = array<i32>} : memref<32x128xf32, #tpu.memory_space<vmem>>, vector<4x128xf32>,
    %255 = arith.select %252, %75, %220 : vector<4x128xi1>, vector<4x128xf32>
    %c4_76 = arith.constant 4 : index
    %c0_77 = arith.constant 0 : index
    %256 = vector.load %arg10[%c4_76, %c0_77] : memref<32x128xf32, #tpu.memory_space<vmem>>, vector<4x128xf32>
    tpu.vector_store %arg10[%c4_76, %c0_77], %255 {strides = array<i32>} : memref<32x128xf32, #tpu.memory_space<vmem>>, vector<4x128xf32>,
    %257 = arith.select %252, %104, %191 : vector<4x128xi1>, vector<4x128xf32>
    %c8_78 = arith.constant 8 : index
    %c0_79 = arith.constant 0 : index
    %258 = vector.load %arg10[%c8_78, %c0_79] : memref<32x128xf32, #tpu.memory_space<vmem>>, vector<4x128xf32>
    tpu.vector_store %arg10[%c8_78, %c0_79], %257 {strides = array<i32>} : memref<32x128xf32, #tpu.memory_space<vmem>>, vector<4x128xf32>,
    %259 = arith.select %252, %133, %162 : vector<4x128xi1>, vector<4x128xf32>
    %c12_80 = arith.constant 12 : index
    %c0_81 = arith.constant 0 : index
    %260 = vector.load %arg10[%c12_80, %c0_81] : memref<32x128xf32, #tpu.memory_space<vmem>>, vector<4x128xf32>
    tpu.vector_store %arg10[%c12_80, %c0_81], %259 {strides = array<i32>} : memref<32x128xf32, #tpu.memory_space<vmem>>, vector<4x128xf32>,
    %261 = arith.select %252, %162, %133 : vector<4x128xi1>, vector<4x128xf32>
    %c16_82 = arith.constant 16 : index
    %c0_83 = arith.constant 0 : index
    %262 = vector.load %arg10[%c16_82, %c0_83] : memref<32x128xf32, #tpu.memory_space<vmem>>, vector<4x128xf32>
    tpu.vector_store %arg10[%c16_82, %c0_83], %261 {strides = array<i32>} : memref<32x128xf32, #tpu.memory_space<vmem>>, vector<4x128xf32>,
    %263 = arith.select %252, %191, %104 : vector<4x128xi1>, vector<4x128xf32>
    %c20_84 = arith.constant 20 : index
    %c0_85 = arith.constant 0 : index
    %264 = vector.load %arg10[%c20_84, %c0_85] : memref<32x128xf32, #tpu.memory_space<vmem>>, vector<4x128xf32>
    tpu.vector_store %arg10[%c20_84, %c0_85], %263 {strides = array<i32>} : memref<32x128xf32, #tpu.memory_space<vmem>>, vector<4x128xf32>,
    %265 = arith.select %252, %220, %75 : vector<4x128xi1>, vector<4x128xf32>
    %c24_86 = arith.constant 24 : index
    %c0_87 = arith.constant 0 : index
    %266 = vector.load %arg10[%c24_86, %c0_87] : memref<32x128xf32, #tpu.memory_space<vmem>>, vector<4x128xf32>
    tpu.vector_store %arg10[%c24_86, %c0_87], %265 {strides = array<i32>} : memref<32x128xf32, #tpu.memory_space<vmem>>, vector<4x128xf32>,
    %267 = arith.select %252, %249, %46 : vector<4x128xi1>, vector<4x128xf32>
    %c28_88 = arith.constant 28 : index
    %c0_89 = arith.constant 0 : index
    %268 = vector.load %arg10[%c28_88, %c0_89] : memref<32x128xf32, #tpu.memory_space<vmem>>, vector<4x128xf32>
    tpu.vector_store %arg10[%c28_88, %c0_89], %267 {strides = array<i32>} : memref<32x128xf32, #tpu.memory_space<vmem>>, vector<4x128xf32>,
    %c0_90 = arith.constant 0 : index
    %c0_91 = arith.constant 0 : index
    %269 = vector.load %arg10[%c0_90, %c0_91] : memref<32x128xf32, #tpu.memory_space<vmem>>, vector<32x128xf32>
    %c0_92 = arith.constant 0 : index
    %c0_93 = arith.constant 0 : index
    %270 = vector.load %arg4[%c0_92, %c0_93] : memref<128x128xf32, #tpu.memory_space<vmem>>, vector<128x128xf32>
    %cst_94 = arith.constant dense<0.000000e+00> : vector<32x128xf32>
    %271 = tpu.matmul %269, %270, %cst_94 {dimension_numbers = #tpu.dot_dimension_numbers<[1], [0], [0], [1], [0, 0, 1, 1], [], []>} : vector<32x128xf32>, vector<128x128xf32>, vector<32x128xf32> -> vector<32x128xf32>
    %272 = vector.broadcast %2 : vector<1x128xf32> to vector<32x128xf32>
    %273 = arith.addf %271, %272 : vector<32x128xf32>
    %cst_95 = arith.constant 0.000000e+00 : f32
    %274 = vector.broadcast %cst_95 : f32 to vector<32x128xf32>
    %275 = arith.maximumf %273, %274 : vector<32x128xf32>
    %c0_96 = arith.constant 0 : index
    %c0_97 = arith.constant 0 : index
    %276 = vector.load %arg5[%c0_96, %c0_97] : memref<128x128xf32, #tpu.memory_space<vmem>>, vector<128x128xf32>
    %cst_98 = arith.constant dense<0.000000e+00> : vector<32x128xf32>
    %277 = tpu.matmul %275, %276, %cst_98 {dimension_numbers = #tpu.dot_dimension_numbers<[1], [0], [0], [1], [0, 0, 1, 1], [], []>} : vector<32x128xf32>, vector<128x128xf32>, vector<32x128xf32> -> vector<32x128xf32>
    %278 = vector.extract_strided_slice %277 {offsets = [0, 0], sizes = [32, 1], strides = [1, 1]} : vector<32x128xf32> to vector<32x1xf32>
    %279 = vector.broadcast %3 : vector<1x1xf32> to vector<32x1xf32>
    %280 = arith.addf %278, %279 : vector<32x1xf32>
    %281 = vector.extract_strided_slice %280 {offsets = [0, 0], sizes = [4, 1], strides = [1, 1]} : vector<32x1xf32> to vector<4x1xf32>
    %282 = vector.extract_strided_slice %280 {offsets = [4, 0], sizes = [4, 1], strides = [1, 1]} : vector<32x1xf32> to vector<4x1xf32>
    %283 = vector.extract_strided_slice %280 {offsets = [8, 0], sizes = [4, 1], strides = [1, 1]} : vector<32x1xf32> to vector<4x1xf32>
    %284 = vector.extract_strided_slice %280 {offsets = [12, 0], sizes = [4, 1], strides = [1, 1]} : vector<32x1xf32> to vector<4x1xf32>
    %285 = vector.extract_strided_slice %280 {offsets = [16, 0], sizes = [4, 1], strides = [1, 1]} : vector<32x1xf32> to vector<4x1xf32>
    %286 = vector.extract_strided_slice %280 {offsets = [20, 0], sizes = [4, 1], strides = [1, 1]} : vector<32x1xf32> to vector<4x1xf32>
    %287 = vector.extract_strided_slice %280 {offsets = [24, 0], sizes = [4, 1], strides = [1, 1]} : vector<32x1xf32> to vector<4x1xf32>
    %288 = vector.extract_strided_slice %280 {offsets = [28, 0], sizes = [4, 1], strides = [1, 1]} : vector<32x1xf32> to vector<4x1xf32>
    %289 = arith.maximumf %281, %282 : vector<4x1xf32>
    %290 = arith.maximumf %289, %283 : vector<4x1xf32>
    %291 = arith.maximumf %290, %284 : vector<4x1xf32>
    %292 = arith.maximumf %291, %285 : vector<4x1xf32>
    %293 = arith.maximumf %292, %286 : vector<4x1xf32>
    %294 = arith.maximumf %293, %287 : vector<4x1xf32>
    %295 = arith.maximumf %294, %288 : vector<4x1xf32>
    %296 = arith.subf %281, %295 : vector<4x1xf32>
    %297 = math.exp %296 : vector<4x1xf32>
    %298 = arith.subf %282, %295 : vector<4x1xf32>
    %299 = math.exp %298 : vector<4x1xf32>
    %300 = arith.subf %283, %295 : vector<4x1xf32>
    %301 = math.exp %300 : vector<4x1xf32>
    %302 = arith.subf %284, %295 : vector<4x1xf32>
    %303 = math.exp %302 : vector<4x1xf32>
    %304 = arith.subf %285, %295 : vector<4x1xf32>
    %305 = math.exp %304 : vector<4x1xf32>
    %306 = arith.subf %286, %295 : vector<4x1xf32>
    %307 = math.exp %306 : vector<4x1xf32>
    %308 = arith.subf %287, %295 : vector<4x1xf32>
    %309 = math.exp %308 : vector<4x1xf32>
    %310 = arith.subf %288, %295 : vector<4x1xf32>
    %311 = math.exp %310 : vector<4x1xf32>
    %312 = arith.addf %297, %299 : vector<4x1xf32>
    %313 = arith.addf %312, %301 : vector<4x1xf32>
    %314 = arith.addf %313, %303 : vector<4x1xf32>
    %315 = arith.addf %314, %305 : vector<4x1xf32>
    %316 = arith.addf %315, %307 : vector<4x1xf32>
    %317 = arith.addf %316, %309 : vector<4x1xf32>
    %318 = arith.addf %317, %311 : vector<4x1xf32>
    %cst_99 = arith.constant 1.000000e+00 : f32
    %319 = vector.broadcast %cst_99 : f32 to vector<4x1xf32>
    %320 = arith.divf %319, %318 : vector<4x1xf32>
    %321 = arith.mulf %297, %320 : vector<4x1xf32>
    %322 = vector.broadcast %321 : vector<4x1xf32> to vector<4x128xf32>
    %323 = arith.mulf %253, %322 : vector<4x128xf32>
    %324 = arith.mulf %299, %320 : vector<4x1xf32>
    %325 = vector.broadcast %324 : vector<4x1xf32> to vector<4x128xf32>
    %326 = arith.mulf %255, %325 : vector<4x128xf32>
    %327 = arith.addf %323, %326 : vector<4x128xf32>
    %328 = arith.addf %253, %255 : vector<4x128xf32>
    %329 = arith.mulf %301, %320 : vector<4x1xf32>
    %330 = vector.broadcast %329 : vector<4x1xf32> to vector<4x128xf32>
    %331 = arith.mulf %257, %330 : vector<4x128xf32>
    %332 = arith.addf %327, %331 : vector<4x128xf32>
    %333 = arith.addf %328, %257 : vector<4x128xf32>
    %334 = arith.mulf %303, %320 : vector<4x1xf32>
    %335 = vector.broadcast %334 : vector<4x1xf32> to vector<4x128xf32>
    %336 = arith.mulf %259, %335 : vector<4x128xf32>
    %337 = arith.addf %332, %336 : vector<4x128xf32>
    %338 = arith.addf %333, %259 : vector<4x128xf32>
    %339 = arith.mulf %305, %320 : vector<4x1xf32>
    %340 = vector.broadcast %339 : vector<4x1xf32> to vector<4x128xf32>
    %341 = arith.mulf %261, %340 : vector<4x128xf32>
    %342 = arith.addf %337, %341 : vector<4x128xf32>
    %343 = arith.addf %338, %261 : vector<4x128xf32>
    %344 = arith.mulf %307, %320 : vector<4x1xf32>
    %345 = vector.broadcast %344 : vector<4x1xf32> to vector<4x128xf32>
    %346 = arith.mulf %263, %345 : vector<4x128xf32>
    %347 = arith.addf %342, %346 : vector<4x128xf32>
    %348 = arith.addf %343, %263 : vector<4x128xf32>
    %349 = arith.mulf %309, %320 : vector<4x1xf32>
    %350 = vector.broadcast %349 : vector<4x1xf32> to vector<4x128xf32>
    %351 = arith.mulf %265, %350 : vector<4x128xf32>
    %352 = arith.addf %347, %351 : vector<4x128xf32>
    %353 = arith.addf %348, %265 : vector<4x128xf32>
    %354 = arith.mulf %311, %320 : vector<4x1xf32>
    %355 = vector.broadcast %354 : vector<4x1xf32> to vector<4x128xf32>
    %356 = arith.mulf %267, %355 : vector<4x128xf32>
    %357 = arith.addf %352, %356 : vector<4x128xf32>
    %358 = arith.addf %353, %267 : vector<4x128xf32>
    %359 = tpu.concatenate %357, %358 in 1 : vector<4x128xf32>, vector<4x128xf32> -> vector<4x256xf32>
    %c0_100 = arith.constant 0 : index
    %c0_101 = arith.constant 0 : index
    %360 = vector.load %arg6[%c0_100, %c0_101] : memref<256x8xf32, #tpu.memory_space<vmem>>, vector<256x8xf32>
    %cst_102 = arith.constant dense<0.000000e+00> : vector<4x8xf32>
    %361 = tpu.matmul %359, %360, %cst_102 {dimension_numbers = #tpu.dot_dimension_numbers<[1], [0], [0], [1], [0, 0, 1, 1], [], []>} : vector<4x256xf32>, vector<256x8xf32>, vector<4x8xf32> -> vector<4x8xf32>
    %362 = vector.broadcast %4 : vector<1x8xf32> to vector<4x8xf32>
    %363 = arith.addf %361, %362 : vector<4x8xf32>
    %c0_103 = arith.constant 0 : index
    %c0_104 = arith.constant 0 : index
    %364 = vector.load %arg8[%c0_103, %c0_104] : memref<4x8xf32, #tpu.memory_space<vmem>>, vector<4x8xf32>
    tpu.vector_store %arg8[%c0_103, %c0_104], %363 {strides = array<i32>} : memref<4x8xf32, #tpu.memory_space<vmem>>, vector<4x8xf32>,
    return
  }
}

</mosaic_0001>

<llo_original>
// kernel: tpu_custom_call.1
$region0: #{tpu_custom_call.1}
  #allocation0 [shape = 'u32[]', space=smem, size = 0x4, offset = 0x4, fixed_abs, tag = 'smem constant byte address 0x4 - core index']
  #allocation1 [shape = 'u32[72,128]{1,0:T(1,128)}', space=vmem, size = 0x9000, scoped, tag = 'internal scratch']
  #allocation2 [shape = 'f32[32,512]{1,0:T(8,128)}', space=vmem, size = 0x10000, scoped, tag = 'scratch operand']
  #allocation3 [shape = 'f32[32,128]{1,0:T(8,128)}', space=vmem, size = 0x4000, scoped, tag = 'scratch operand']
  %s0 = inlined_call_operand.hbm [shape: f32[32,32], index: 0, kind: input, shape index: {}]
  %s1 = inlined_call_operand.hbm [shape: f32[32,64], index: 1, kind: input, shape index: {}]
  %s2 = inlined_call_operand.vmem [shape: f32[64,512], index: 2, kind: input, shape index: {}]
  %s3 = inlined_call_operand.hbm [shape: f32[128,512], index: 3, kind: input, shape index: {}]
  %s4 = inlined_call_operand.hbm [shape: f32[128,128], index: 4, kind: input, shape index: {}]
  %s5 = inlined_call_operand.hbm [shape: f32[128,128], index: 5, kind: input, shape index: {}]
  %s6 = inlined_call_operand.vmem [shape: f32[256,8], index: 6, kind: input, shape index: {}]
  %s7 = inlined_call_operand.hbm [shape: f32[8,512], index: 7, kind: input, shape index: {}]
  %s8 = inlined_call_operand.hbm [shape: f32[4,8], index: 8, kind: output, shape index: {}]
  %s9 = sld [smem:[#allocation0]]
  $region66: #{tpu_custom_call.1} parent=0
    _
  %s11 = ssub.s32 1, %s9
  %s12 = scalar_select 0, %s11, %s9
  $region1: #{tpu_custom_call.1} parent=0
    #allocation4 [shape = 'u8[16384]{0}', space=vmem, size = 0x4000, scoped, tag = 'input window, operand 0, single buffered']
    #allocation5 [shape = 's32[1]{0}', space=sflag, size = 0x4, scoped, tag = 'scoped memory for tpu_custom_call.1']
    #allocation6 [shape = 's32[1]{0}', space=sflag, size = 0x4, scoped, tag = 'scoped memory for tpu_custom_call.1']
    #allocation7 [shape = 'u8[16384]{0}', space=vmem, size = 0x4000, scoped, tag = 'input window, operand 1, single buffered']
    #allocation8 [shape = 's32[1]{0}', space=sflag, size = 0x4, scoped, tag = 'scoped memory for tpu_custom_call.1']
    #allocation9 [shape = 'u8[262144]{0}', space=vmem, size = 0x40000, scoped, tag = 'input window, operand 3, single buffered']
    #allocation10 [shape = 'u8[65536]{0}', space=vmem, size = 0x10000, scoped, tag = 'input window, operand 4, single buffered']
    #allocation11 [shape = 's32[1]{0}', space=sflag, size = 0x4, scoped, tag = 'scoped memory for tpu_custom_call.1']
    #allocation12 [shape = 'u8[65536]{0}', space=vmem, size = 0x10000, scoped, tag = 'input window, operand 5, single buffered']
    #allocation13 [shape = 'u8[16384]{0}', space=vmem, size = 0x4000, scoped, tag = 'input window, operand 7, single buffered']
    #allocation14 [shape = 's32[1]{0}', space=sflag, size = 0x4, scoped, tag = 'scoped memory for tpu_custom_call.1']
    #allocation15 [shape = 'u8[2048]{0}', space=vmem, size = 0x800, scoped, tag = 'output window, operand 0, single buffered']
    %13 = vsyncpa [#allocation5], 0
    %14 = vsyncpa [#allocation8], 0
    %15 = vsyncpa [#allocation11], 0
    %16 = vsyncpa [#allocation14], 0
    %17 = vsyncpa [#allocation6], 0
    // Predicated region
    $region2: #{tpu_custom_call.1} parent=1 // pred_check
      _
    $region3: #{tpu_custom_call.1} parent=1 // pred_check_branch
      %19 = sbr.rel (0) target = $region5
    $region4: #{tpu_custom_call.1} parent=1 // pred_region
      %21 = vsyncadd [#allocation5], 0
      %s22 = sshll.u32 %s0, 4
      %s23 = int_to_ptr.hbm [resolvable:$true] %s22
      %s24 = sshll.u32 [#allocation4], 4
      %s25 = int_to_ptr.vmem [resolvable:$true] %s24
      %30 = dma.hbm_to_vmem [thread:$0]  %s23, 512, %s25, [#allocation5], 128, 128, 8
    $region5: #{tpu_custom_call.1} parent=1 // pred_fallthru
      _
    // Predicated region
    $region6: #{tpu_custom_call.1} parent=1 // pred_check
      _
    $region7: #{tpu_custom_call.1} parent=1 // pred_check_branch
      %32 = sbr.rel (0) target = $region9
    $region8: #{tpu_custom_call.1} parent=1 // pred_region
      %34 = vsyncadd [#allocation8], 0
      %s35 = sshll.u32 %s1, 4
      %s36 = int_to_ptr.hbm [resolvable:$true] %s35
      %s37 = sshll.u32 [#allocation7], 4
      %s38 = int_to_ptr.vmem [resolvable:$true] %s37
      %43 = dma.hbm_to_vmem [thread:$0]  %s36, 512, %s38, [#allocation8], 128, 128, 8
    $region9: #{tpu_custom_call.1} parent=1 // pred_fallthru
      _
    // Predicated region
    $region10: #{tpu_custom_call.1} parent=1 // pred_check
      _
    $region11: #{tpu_custom_call.1} parent=1 // pred_check_branch
      %45 = sbr.rel (0) target = $region13
    $region12: #{tpu_custom_call.1} parent=1 // pred_region
      _
    $region13: #{tpu_custom_call.1} parent=1 // pred_fallthru
      _
    // Predicated region
    $region14: #{tpu_custom_call.1} parent=1 // pred_check
      _
    $region15: #{tpu_custom_call.1} parent=1 // pred_check_branch
      %47 = sbr.rel (0) target = $region17
    $region16: #{tpu_custom_call.1} parent=1 // pred_region
      %49 = vsyncadd [#allocation8], 0
      %s50 = sshll.u32 %s3, 4
      %s51 = int_to_ptr.hbm [resolvable:$true] %s50
      %s52 = sshll.u32 [#allocation9], 4
      %s53 = int_to_ptr.vmem [resolvable:$true] %s52
      %58 = dma.hbm_to_vmem [thread:$0]  %s51, 8192, %s53, [#allocation8], 512, 512, 32
    $region17: #{tpu_custom_call.1} parent=1 // pred_fallthru
      _
    // Predicated region
    $region18: #{tpu_custom_call.1} parent=1 // pred_check
      _
    $region19: #{tpu_custom_call.1} parent=1 // pred_check_branch
      %60 = sbr.rel (0) target = $region21
    $region20: #{tpu_custom_call.1} parent=1 // pred_region
      %62 = vsyncadd [#allocation11], 0
      %s63 = sshll.u32 %s4, 4
      %s64 = int_to_ptr.hbm [resolvable:$true] %s63
      %s65 = sshll.u32 [#allocation10], 4
      %s66 = int_to_ptr.vmem [resolvable:$true] %s65
      %71 = dma.hbm_to_vmem [thread:$0]  %s64, 2048, %s66, [#allocation11], 128, 128, 8
    $region21: #{tpu_custom_call.1} parent=1 // pred_fallthru
      _
    // Predicated region
    $region22: #{tpu_custom_call.1} parent=1 // pred_check
      _
    $region23: #{tpu_custom_call.1} parent=1 // pred_check_branch
      %73 = sbr.rel (0) target = $region25
    $region24: #{tpu_custom_call.1} parent=1 // pred_region
      %75 = vsyncadd [#allocation11], 0
      %s76 = sshll.u32 %s5, 4
      %s77 = int_to_ptr.hbm [resolvable:$true] %s76
      %s78 = sshll.u32 [#allocation12], 4
      %s79 = int_to_ptr.vmem [resolvable:$true] %s78
      %84 = dma.hbm_to_vmem [thread:$0]  %s77, 2048, %s79, [#allocation11], 128, 128, 8
    $region25: #{tpu_custom_call.1} parent=1 // pred_fallthru
      _
    // Predicated region
    $region26: #{tpu_custom_call.1} parent=1 // pred_check
      _
    $region27: #{tpu_custom_call.1} parent=1 // pred_check_branch
      %86 = sbr.rel (0) target = $region29
    $region28: #{tpu_custom_call.1} parent=1 // pred_region
      _
    $region29: #{tpu_custom_call.1} parent=1 // pred_fallthru
      _
    // Predicated region
    $region30: #{tpu_custom_call.1} parent=1 // pred_check
      _
    $region31: #{tpu_custom_call.1} parent=1 // pred_check_branch
      %88 = sbr.rel (0) target = $region33
    $region32: #{tpu_custom_call.1} parent=1 // pred_region
      %90 = vsyncadd [#allocation14], 0
      %s92 = sshll.u32 %s7, 4
      %s93 = int_to_ptr.hbm [resolvable:$true] %s92
      %s94 = sshll.u32 [#allocation13], 4
      %s95 = int_to_ptr.vmem [resolvable:$true] %s94
      %97 = dma.hbm_to_vmem [thread:$0]  %s93, 512, %s95, [#allocation14]
    $region33: #{tpu_custom_call.1} parent=1 // pred_fallthru
      _
    // Predicated region
    $region34: #{tpu_custom_call.1} parent=1 // pred_check
      _
    $region35: #{tpu_custom_call.1} parent=1 // pred_check_branch
      %99 = sbr.rel (0) target = $region37
    $region36: #{tpu_custom_call.1} parent=1 // pred_region
      %101 = dma.done [#allocation5], 512
    $region37: #{tpu_custom_call.1} parent=1 // pred_fallthru
      _
    // Predicated region
    $region38: #{tpu_custom_call.1} parent=1 // pred_check
      _
    $region39: #{tpu_custom_call.1} parent=1 // pred_check_branch
      %103 = sbr.rel (0) target = $region41
    $region40: #{tpu_custom_call.1} parent=1 // pred_region
      %105 = dma.done [#allocation8], 512
    $region41: #{tpu_custom_call.1} parent=1 // pred_fallthru
      _
    // Predicated region
    $region42: #{tpu_custom_call.1} parent=1 // pred_check
      _
    $region43: #{tpu_custom_call.1} parent=1 // pred_check_branch
      %107 = sbr.rel (0) target = $region45
    $region44: #{tpu_custom_call.1} parent=1 // pred_region
      %109 = dma.done [#allocation8], 8192
    $region45: #{tpu_custom_call.1} parent=1 // pred_fallthru
      _
    // Predicated region
    $region46: #{tpu_custom_call.1} parent=1 // pred_check
      _
    $region47: #{tpu_custom_call.1} parent=1 // pred_check_branch
      %111 = sbr.rel (0) target = $region49
    $region48: #{tpu_custom_call.1} parent=1 // pred_region
      %113 = dma.done [#allocation11], 2048
    $region49: #{tpu_custom_call.1} parent=1 // pred_fallthru
      _
    // Predicated region
    $region50: #{tpu_custom_call.1} parent=1 // pred_check
      _
    $region51: #{tpu_custom_call.1} parent=1 // pred_check_branch
      %115 = sbr.rel (0) target = $region53
    $region52: #{tpu_custom_call.1} parent=1 // pred_region
      %117 = dma.done [#allocation11], 2048
    $region53: #{tpu_custom_call.1} parent=1 // pred_fallthru
      _
    // Predicated region
    $region54: #{tpu_custom_call.1} parent=1 // pred_check
      _
    $region55: #{tpu_custom_call.1} parent=1 // pred_check_branch
      %119 = sbr.rel (0) target = $region57
    $region56: #{tpu_custom_call.1} parent=1 // pred_region
      %121 = dma.done [#allocation14], 512
    $region57: #{tpu_custom_call.1} parent=1 // pred_fallthru
      _
    %v122 = vld [vmem:[#allocation13] ss:$0 sm:$0xff]
    %s123 = scalar_lea.vmem [#allocation13], 1
    %v124 = vld [vmem:[%s123] ss:$8 sm:$0xf]
    %v125 = vld [vmem:[#allocation13 + $0x2] ss:$0 sm:$0xff]
    %v126 = vld [vmem:[#allocation13 + $0x3] ss:$0 sm:$0xff]
    %v127 = vld [vmem:[#allocation13 + $0x4] ss:$0 sm:$0xff]
    %v128 = vld [vmem:[#allocation4] sm:$0xff]
    %v129 = vld [vmem:[#allocation4 + $0x8] sm:$0xff]
    %v130 = vld [vmem:[#allocation4 + $0x10] sm:$0xff]
    %v131 = vld [vmem:[#allocation4 + $0x18] sm:$0xff]
    %v132 = vld [vmem:[#allocation7] sm:$0xff]
    %v133 = vld [vmem:[#allocation7 + $0x8] sm:$0xff]
    %v134 = vld [vmem:[#allocation7 + $0x10] sm:$0xff]
    %v135 = vld [vmem:[#allocation7 + $0x18] sm:$0xff]
    %vm136 = vcmask 261120
    %v138 = vsel %vm136, %v128, 0
    %v141 = vsel %vm136, %v129, 0
    %v144 = vsel %vm136, %v130, 0
    %v147 = vsel %vm136, %v131, 0
    %149 = vmatpush.msra.mxu0 0.0
    %150 = vmatpush.msra.mxu0 0.0
    %151 = vmatpush.msra.mxu0 0.0
    %152 = vmatpush.msra.mxu0 0.0
    %153 = vmatpush.msra.mxu0 0.0
    %154 = vmatpush.msra.mxu0 0.0
    %155 = vmatpush.msra.mxu0 0.0
    %156 = vmatpush.msra.mxu0 0.0
    %157 = vmatpush.msra.mxu0 0.0
    %158 = vmatpush.msra.mxu0 0.0
    %159 = vmatpush.msra.mxu0 0.0
    %160 = vmatpush.msra.mxu0 0.0
    %161 = vmatpush.msra.mxu0 %v135
    %162 = vmatpush.msra.mxu0 %v134
    %163 = vmatpush.msra.mxu0 %v133
    %164 = vmatpush.msra.mxu0 %v132
    %165 = vmatmul.f32.gmra.mxu0 %v138
    %v166 = vpop.f32.mrf.mxu0
    %v167 = vadd.f32 %v122, %v166
    %168 = vmatmul.f32.gmra.mxu0 %v141
    %v169 = vpop.f32.mrf.mxu0
    %v170 = vadd.f32 %v122, %v169
    %171 = vmatmul.f32.gmra.mxu0 %v144
    %v172 = vpop.f32.mrf.mxu0
    %v173 = vadd.f32 %v122, %v172
    %174 = vmatmul.f32.gmra.mxu0 %v147
    %v175 = vpop.f32.mrf.mxu0
    %v176 = vadd.f32 %v122, %v175
    %177 = vdwg.mxu0
    %v178 = vtanh.pop %v167
    %v179 = vtanh.pop %v170
    %v180 = vtanh.pop %v173
    %v181 = vtanh.pop %v176
    %v182 = vld [vmem:[%s2] sm:$0xff]
    %v183 = vld [vmem:[%s2 + $0x8] sm:$0xff]
    %v184 = vld [vmem:[%s2 + $0x10] sm:$0xff]
    %v185 = vld [vmem:[%s2 + $0x18] sm:$0xff]
    %v186 = vld [vmem:[%s2 + $0x20] sm:$0xff]
    %v187 = vld [vmem:[%s2 + $0x28] sm:$0xff]
    %v188 = vld [vmem:[%s2 + $0x30] sm:$0xff]
    %v189 = vld [vmem:[%s2 + $0x38] sm:$0xff]
    %v190 = vld [vmem:[%s2 + $0x40] sm:$0xff]
    %v191 = vld [vmem:[%s2 + $0x48] sm:$0xff]
    %v192 = vld [vmem:[%s2 + $0x50] sm:$0xff]
    %v193 = vld [vmem:[%s2 + $0x58] sm:$0xff]
    %v194 = vld [vmem:[%s2 + $0x60] sm:$0xff]
    %v195 = vld [vmem:[%s2 + $0x68] sm:$0xff]
    %v196 = vld [vmem:[%s2 + $0x70] sm:$0xff]
    %v197 = vld [vmem:[%s2 + $0x78] sm:$0xff]
    %v198 = vld [vmem:[%s2 + $0x80] sm:$0xff]
    %v199 = vld [vmem:[%s2 + $0x88] sm:$0xff]
    %v200 = vld [vmem:[%s2 + $0x90] sm:$0xff]
    %v201 = vld [vmem:[%s2 + $0x98] sm:$0xff]
    %v202 = vld [vmem:[%s2 + $0xa0] sm:$0xff]
    %v203 = vld [vmem:[%s2 + $0xa8] sm:$0xff]
    %v204 = vld [vmem:[%s2 + $0xb0] sm:$0xff]
    %v205 = vld [vmem:[%s2 + $0xb8] sm:$0xff]
    %v206 = vld [vmem:[%s2 + $0xc0] sm:$0xff]
    %v207 = vld [vmem:[%s2 + $0xc8] sm:$0xff]
    %v208 = vld [vmem:[%s2 + $0xd0] sm:$0xff]
    %v209 = vld [vmem:[%s2 + $0xd8] sm:$0xff]
    %v210 = vld [vmem:[%s2 + $0xe0] sm:$0xff]
    %v211 = vld [vmem:[%s2 + $0xe8] sm:$0xff]
    %v212 = vld [vmem:[%s2 + $0xf0] sm:$0xff]
    %v213 = vld [vmem:[%s2 + $0xf8] sm:$0xff]
    %v215 = vperm.slane %v124, 0
    %v216 = vperm.slane %v124, 1
    %v217 = vperm.slane %v124, 2
    %v218 = vperm.slane %v124, 3
    %vm223 = vcmask 523264
    %v225 = vsel %vm223, %v178, 0
    %v228 = vsel %vm223, %v179, 0
    %v231 = vsel %vm223, %v180, 0
    %v234 = vsel %vm223, %v181, 0
    %236 = vmatpush.msra.mxu0 0.0
    %237 = vmatpush.msra.mxu0 0.0
    %238 = vmatpush.msra.mxu0 0.0
    %239 = vmatpush.msra.mxu0 0.0
    %240 = vmatpush.msra.mxu0 0.0
    %241 = vmatpush.msra.mxu0 0.0
    %242 = vmatpush.msra.mxu0 0.0
    %243 = vmatpush.msra.mxu0 0.0
    %244 = vmatpush.msra.mxu0 %v210
    %245 = vmatpush.msra.mxu0 %v206
    %246 = vmatpush.msra.mxu0 %v202
    %247 = vmatpush.msra.mxu0 %v198
    %248 = vmatpush.msra.mxu0 %v194
    %249 = vmatpush.msra.mxu0 %v190
    %250 = vmatpush.msra.mxu0 %v186
    %251 = vmatpush.msra.mxu0 %v182
    %252 = vmatmul.f32.gmra.mxu0 %v225
    %v253 = vpop.f32.mrf.mxu0
    %v254 = vadd.f32 %v215, %v253
    %255 = vmatmul.f32.gmra.mxu0 %v228
    %v256 = vpop.f32.mrf.mxu0
    %v257 = vadd.f32 %v215, %v256
    %258 = vmatmul.f32.gmra.mxu0 %v231
    %v259 = vpop.f32.mrf.mxu0
    %v260 = vadd.f32 %v215, %v259
    %261 = vmatmul.f32.gmra.mxu0 %v234
    %v262 = vpop.f32.mrf.mxu0
    %v263 = vadd.f32 %v215, %v262
    %264 = vdwg.mxu0
    %265 = vmatpush.msra.mxu0 0.0
    %266 = vmatpush.msra.mxu0 0.0
    %267 = vmatpush.msra.mxu0 0.0
    %268 = vmatpush.msra.mxu0 0.0
    %269 = vmatpush.msra.mxu0 0.0
    %270 = vmatpush.msra.mxu0 0.0
    %271 = vmatpush.msra.mxu0 0.0
    %272 = vmatpush.msra.mxu0 0.0
    %273 = vmatpush.msra.mxu0 %v211
    %274 = vmatpush.msra.mxu0 %v207
    %275 = vmatpush.msra.mxu0 %v203
    %276 = vmatpush.msra.mxu0 %v199
    %277 = vmatpush.msra.mxu0 %v195
    %278 = vmatpush.msra.mxu0 %v191
    %279 = vmatpush.msra.mxu0 %v187
    %280 = vmatpush.msra.mxu0 %v183
    %281 = vmatmul.f32.gmra.mxu0 %v225
    %v282 = vpop.f32.mrf.mxu0
    %v283 = vadd.f32 %v216, %v282
    %284 = vmatmul.f32.gmra.mxu0 %v228
    %v285 = vpop.f32.mrf.mxu0
    %v286 = vadd.f32 %v216, %v285
    %287 = vmatmul.f32.gmra.mxu0 %v231
    %v288 = vpop.f32.mrf.mxu0
    %v289 = vadd.f32 %v216, %v288
    %290 = vmatmul.f32.gmra.mxu0 %v234
    %v291 = vpop.f32.mrf.mxu0
    %v292 = vadd.f32 %v216, %v291
    %293 = vdwg.mxu0
    %294 = vmatpush.msra.mxu0 0.0
    %295 = vmatpush.msra.mxu0 0.0
    %296 = vmatpush.msra.mxu0 0.0
    %297 = vmatpush.msra.mxu0 0.0
    %298 = vmatpush.msra.mxu0 0.0
    %299 = vmatpush.msra.mxu0 0.0
    %300 = vmatpush.msra.mxu0 0.0
    %301 = vmatpush.msra.mxu0 0.0
    %302 = vmatpush.msra.mxu0 %v212
    %303 = vmatpush.msra.mxu0 %v208
    %304 = vmatpush.msra.mxu0 %v204
    %305 = vmatpush.msra.mxu0 %v200
    %306 = vmatpush.msra.mxu0 %v196
    %307 = vmatpush.msra.mxu0 %v192
    %308 = vmatpush.msra.mxu0 %v188
    %309 = vmatpush.msra.mxu0 %v184
    %310 = vmatmul.f32.gmra.mxu0 %v225
    %v311 = vpop.f32.mrf.mxu0
    %v312 = vadd.f32 %v217, %v311
    %313 = vmatmul.f32.gmra.mxu0 %v228
    %v314 = vpop.f32.mrf.mxu0
    %v315 = vadd.f32 %v217, %v314
    %316 = vmatmul.f32.gmra.mxu0 %v231
    %v317 = vpop.f32.mrf.mxu0
    %v318 = vadd.f32 %v217, %v317
    %319 = vmatmul.f32.gmra.mxu0 %v234
    %v320 = vpop.f32.mrf.mxu0
    %v321 = vadd.f32 %v217, %v320
    %322 = vdwg.mxu0
    %323 = vmatpush.msra.mxu0 0.0
    %324 = vmatpush.msra.mxu0 0.0
    %325 = vmatpush.msra.mxu0 0.0
    %326 = vmatpush.msra.mxu0 0.0
    %327 = vmatpush.msra.mxu0 0.0
    %328 = vmatpush.msra.mxu0 0.0
    %329 = vmatpush.msra.mxu0 0.0
    %330 = vmatpush.msra.mxu0 0.0
    %331 = vmatpush.msra.mxu0 %v213
    %332 = vmatpush.msra.mxu0 %v209
    %333 = vmatpush.msra.mxu0 %v205
    %334 = vmatpush.msra.mxu0 %v201
    %335 = vmatpush.msra.mxu0 %v197
    %336 = vmatpush.msra.mxu0 %v193
    %337 = vmatpush.msra.mxu0 %v189
    %338 = vmatpush.msra.mxu0 %v185
    %339 = vmatmul.f32.gmra.mxu0 %v225
    %v340 = vpop.f32.mrf.mxu0
    %v341 = vadd.f32 %v218, %v340
    %342 = vmatmul.f32.gmra.mxu0 %v228
    %v343 = vpop.f32.mrf.mxu0
    %v344 = vadd.f32 %v218, %v343
    %345 = vmatmul.f32.gmra.mxu0 %v231
    %v346 = vpop.f32.mrf.mxu0
    %v347 = vadd.f32 %v218, %v346
    %348 = vmatmul.f32.gmra.mxu0 %v234
    %v349 = vpop.f32.mrf.mxu0
    %v350 = vadd.f32 %v218, %v349
    %351 = vdwg.mxu0
    %352 = vst [vmem:[#allocation2] sm:$0xff] %v254
    %353 = vst [vmem:[#allocation2 + $0x8] sm:$0xff] %v283
    %354 = vst [vmem:[#allocation2 + $0x10] sm:$0xff] %v312
    %355 = vst [vmem:[#allocation2 + $0x18] sm:$0xff] %v341
    %356 = vst [vmem:[#allocation2 + $0x20] sm:$0xff] %v257
    %357 = vst [vmem:[#allocation2 + $0x28] sm:$0xff] %v286
    %358 = vst [vmem:[#allocation2 + $0x30] sm:$0xff] %v315
    %359 = vst [vmem:[#allocation2 + $0x38] sm:$0xff] %v344
    %360 = vst [vmem:[#allocation2 + $0x40] sm:$0xff] %v260
    %361 = vst [vmem:[#allocation2 + $0x48] sm:$0xff] %v289
    %362 = vst [vmem:[#allocation2 + $0x50] sm:$0xff] %v318
    %363 = vst [vmem:[#allocation2 + $0x58] sm:$0xff] %v347
    %364 = vst [vmem:[#allocation2 + $0x60] sm:$0xff] %v263
    %365 = vst [vmem:[#allocation2 + $0x68] sm:$0xff] %v292
    %366 = vst [vmem:[#allocation2 + $0x70] sm:$0xff] %v321
    %367 = vst [vmem:[#allocation2 + $0x78] sm:$0xff] %v350
    %v368 = vld [vmem:[#allocation2] sm:$0xf]
    %v369 = vld [vmem:[#allocation2 + $0x8] sm:$0xf]
    %v370 = vld [vmem:[#allocation2 + $0x10] sm:$0xf]
    %v371 = vld [vmem:[#allocation2 + $0x18] sm:$0xf]
    %v372 = vld [vmem:[#allocation9] sm:$0xff]
    %v373 = vld [vmem:[#allocation9 + $0x8] sm:$0xff]
    %v374 = vld [vmem:[#allocation9 + $0x10] sm:$0xff]
    %v375 = vld [vmem:[#allocation9 + $0x18] sm:$0xff]
    %v376 = vld [vmem:[#allocation9 + $0x20] sm:$0xff]
    %v377 = vld [vmem:[#allocation9 + $0x28] sm:$0xff]
    %v378 = vld [vmem:[#allocation9 + $0x30] sm:$0xff]
    %v379 = vld [vmem:[#allocation9 + $0x38] sm:$0xff]
    %v380 = vld [vmem:[#allocation9 + $0x40] sm:$0xff]
    %v381 = vld [vmem:[#allocation9 + $0x48] sm:$0xff]
    %v382 = vld [vmem:[#allocation9 + $0x50] sm:$0xff]
    %v383 = vld [vmem:[#allocation9 + $0x58] sm:$0xff]
    %v384 = vld [vmem:[#allocation9 + $0x60] sm:$0xff]
    %v385 = vld [vmem:[#allocation9 + $0x68] sm:$0xff]
    %v386 = vld [vmem:[#allocation9 + $0x70] sm:$0xff]
    %v387 = vld [vmem:[#allocation9 + $0x78] sm:$0xff]
    %v388 = vld [vmem:[#allocation9 + $0x80] sm:$0xff]
    %v389 = vld [vmem:[#allocation9 + $0x88] sm:$0xff]
    %v390 = vld [vmem:[#allocation9 + $0x90] sm:$0xff]
    %v391 = vld [vmem:[#allocation9 + $0x98] sm:$0xff]
    %v392 = vld [vmem:[#allocation9 + $0xa0] sm:$0xff]
    %v393 = vld [vmem:[#allocation9 + $0xa8] sm:$0xff]
    %v394 = vld [vmem:[#allocation9 + $0xb0] sm:$0xff]
    %v395 = vld [vmem:[#allocation9 + $0xb8] sm:$0xff]
    %v396 = vld [vmem:[#allocation9 + $0xc0] sm:$0xff]
    %v397 = vld [vmem:[#allocation9 + $0xc8] sm:$0xff]
    %v398 = vld [vmem:[#allocation9 + $0xd0] sm:$0xff]
    %v399 = vld [vmem:[#allocation9 + $0xd8] sm:$0xff]
    %v400 = vld [vmem:[#allocation9 + $0xe0] sm:$0xff]
    %v401 = vld [vmem:[#allocation9 + $0xe8] sm:$0xff]
    %v402 = vld [vmem:[#allocation9 + $0xf0] sm:$0xff]
    %v403 = vld [vmem:[#allocation9 + $0xf8] sm:$0xff]
    %v404 = vld [vmem:[#allocation9 + $0x100] sm:$0xff]
    %v405 = vld [vmem:[#allocation9 + $0x108] sm:$0xff]
    %v406 = vld [vmem:[#allocation9 + $0x110] sm:$0xff]
    %v407 = vld [vmem:[#allocation9 + $0x118] sm:$0xff]
    %v408 = vld [vmem:[#allocation9 + $0x120] sm:$0xff]
    %v409 = vld [vmem:[#allocation9 + $0x128] sm:$0xff]
    %v410 = vld [vmem:[#allocation9 + $0x130] sm:$0xff]
    %v411 = vld [vmem:[#allocation9 + $0x138] sm:$0xff]
    %v412 = vld [vmem:[#allocation9 + $0x140] sm:$0xff]
    %v413 = vld [vmem:[#allocation9 + $0x148] sm:$0xff]
    %v414 = vld [vmem:[#allocation9 + $0x150] sm:$0xff]
    %v415 = vld [vmem:[#allocation9 + $0x158] sm:$0xff]
    %v416 = vld [vmem:[#allocation9 + $0x160] sm:$0xff]
    %v417 = vld [vmem:[#allocation9 + $0x168] sm:$0xff]
    %v418 = vld [vmem:[#allocation9 + $0x170] sm:$0xff]
    %v419 = vld [vmem:[#allocation9 + $0x178] sm:$0xff]
    %v420 = vld [vmem:[#allocation9 + $0x180] sm:$0xff]
    %v421 = vld [vmem:[#allocation9 + $0x188] sm:$0xff]
    %v422 = vld [vmem:[#allocation9 + $0x190] sm:$0xff]
    %v423 = vld [vmem:[#allocation9 + $0x198] sm:$0xff]
    %v424 = vld [vmem:[#allocation9 + $0x1a0] sm:$0xff]
    %v425 = vld [vmem:[#allocation9 + $0x1a8] sm:$0xff]
    %v426 = vld [vmem:[#allocation9 + $0x1b0] sm:$0xff]
    %v427 = vld [vmem:[#allocation9 + $0x1b8] sm:$0xff]
    %v428 = vld [vmem:[#allocation9 + $0x1c0] sm:$0xff]
    %v429 = vld [vmem:[#allocation9 + $0x1c8] sm:$0xff]
    %v430 = vld [vmem:[#allocation9 + $0x1d0] sm:$0xff]
    %v431 = vld [vmem:[#allocation9 + $0x1d8] sm:$0xff]
    %v432 = vld [vmem:[#allocation9 + $0x1e0] sm:$0xff]
    %v433 = vld [vmem:[#allocation9 + $0x1e8] sm:$0xff]
    %v434 = vld [vmem:[#allocation9 + $0x1f0] sm:$0xff]
    %v435 = vld [vmem:[#allocation9 + $0x1f8] sm:$0xff]
    %436 = vmatpush.msra.mxu0 %v432
    %437 = vmatpush.msra.mxu0 %v428
    %438 = vmatpush.msra.mxu0 %v424
    %439 = vmatpush.msra.mxu0 %v420
    %440 = vmatpush.msra.mxu0 %v416
    %441 = vmatpush.msra.mxu0 %v412
    %442 = vmatpush.msra.mxu0 %v408
    %443 = vmatpush.msra.mxu0 %v404
    %444 = vmatpush.msra.mxu0 %v400
    %445 = vmatpush.msra.mxu0 %v396
    %446 = vmatpush.msra.mxu0 %v392
    %447 = vmatpush.msra.mxu0 %v388
    %448 = vmatpush.msra.mxu0 %v384
    %449 = vmatpush.msra.mxu0 %v380
    %450 = vmatpush.msra.mxu0 %v376
    %451 = vmatpush.msra.mxu0 %v372
    %452 = vmatmul.f32.gmra.mxu0 0.0
    %v453 = vpop.f32.mrf.mxu0
    %v454 = vadd.f32 0.0, %v453
    %455 = vdwg.mxu0
    %456 = vmatpush.msra.mxu0 %v433
    %457 = vmatpush.msra.mxu0 %v429
    %458 = vmatpush.msra.mxu0 %v425
    %459 = vmatpush.msra.mxu0 %v421
    %460 = vmatpush.msra.mxu0 %v417
    %461 = vmatpush.msra.mxu0 %v413
    %462 = vmatpush.msra.mxu0 %v409
    %463 = vmatpush.msra.mxu0 %v405
    %464 = vmatpush.msra.mxu0 %v401
    %465 = vmatpush.msra.mxu0 %v397
    %466 = vmatpush.msra.mxu0 %v393
    %467 = vmatpush.msra.mxu0 %v389
    %468 = vmatpush.msra.mxu0 %v385
    %469 = vmatpush.msra.mxu0 %v381
    %470 = vmatpush.msra.mxu0 %v377
    %471 = vmatpush.msra.mxu0 %v373
    %472 = vmatmul.f32.gmra.mxu0 0.0
    %v473 = vpop.f32.mrf.mxu0
    %v474 = vadd.f32 0.0, %v473
    %475 = vdwg.mxu0
    %476 = vmatpush.msra.mxu0 %v434
    %477 = vmatpush.msra.mxu0 %v430
    %478 = vmatpush.msra.mxu0 %v426
    %479 = vmatpush.msra.mxu0 %v422
    %480 = vmatpush.msra.mxu0 %v418
    %481 = vmatpush.msra.mxu0 %v414
    %482 = vmatpush.msra.mxu0 %v410
    %483 = vmatpush.msra.mxu0 %v406
    %484 = vmatpush.msra.mxu0 %v402
    %485 = vmatpush.msra.mxu0 %v398
    %486 = vmatpush.msra.mxu0 %v394
    %487 = vmatpush.msra.mxu0 %v390
    %488 = vmatpush.msra.mxu0 %v386
    %489 = vmatpush.msra.mxu0 %v382
    %490 = vmatpush.msra.mxu0 %v378
    %491 = vmatpush.msra.mxu0 %v374
    %492 = vmatmul.f32.gmra.mxu0 0.0
    %v493 = vpop.f32.mrf.mxu0
    %v494 = vadd.f32 0.0, %v493
    %495 = vdwg.mxu0
    %496 = vmatpush.msra.mxu0 %v435
    %497 = vmatpush.msra.mxu0 %v431
    %498 = vmatpush.msra.mxu0 %v427
    %499 = vmatpush.msra.mxu0 %v423
    %500 = vmatpush.msra.mxu0 %v419
    %501 = vmatpush.msra.mxu0 %v415
    %502 = vmatpush.msra.mxu0 %v411
    %503 = vmatpush.msra.mxu0 %v407
    %504 = vmatpush.msra.mxu0 %v403
    %505 = vmatpush.msra.mxu0 %v399
    %506 = vmatpush.msra.mxu0 %v395
    %507 = vmatpush.msra.mxu0 %v391
    %508 = vmatpush.msra.mxu0 %v387
    %509 = vmatpush.msra.mxu0 %v383
    %510 = vmatpush.msra.mxu0 %v379
    %511 = vmatpush.msra.mxu0 %v375
    %512 = vmatmul.f32.gmra.mxu0 0.0
    %v513 = vpop.f32.mrf.mxu0
    %v514 = vadd.f32 0.0, %v513
    %515 = vdwg.mxu0
    %v516 = vadd.f32 %v368, %v454
    %v517 = vadd.f32 %v369, %v474
    %v518 = vadd.f32 %v370, %v494
    %v519 = vadd.f32 %v371, %v514
    %v520 = vxor.u32 %v516, 2147483648
    %v521 = vmul.f32 %v520, 1.442695
    %v522 = vpow.pop %v521
    %v523 = vadd.f32 %v522, 1.0
    %v524 = vrcp.pop %v523
    %v525 = vmul.f32 %v523, %v524
    %v526 = vsub.f32 1.0, %v525
    %v527 = vmul.f32 %v524, %v526
    %v528 = vadd.f32 %v524, %v527
    %vm529 = vweird.f32 %v523
    %vm530 = vweird.f32 %v524
    %vm531 = vmor %vm529, %vm530
    %v532 = vsel %vm531, %v524, %v528
    %v533 = vand.u32 2147483647, %v523
    %vm534 = vcmp.eq.f32.partialorder %v533, 8.507059e+37
    %v535 = vand.u32 %v523, 2147483648
    %v536 = vor.u32 1.1754944e-38, %v535
    %v537 = vsel %vm534, %v536, %v532
    %v538 = vmul.f32 1.0, %v537
    %v539 = vxor.u32 %v517, 2147483648
    %v540 = vmul.f32 %v539, 1.442695
    %v541 = vpow.pop %v540
    %v542 = vadd.f32 %v541, 1.0
    %v543 = vrcp.pop %v542
    %v544 = vmul.f32 %v542, %v543
    %v545 = vsub.f32 1.0, %v544
    %v546 = vmul.f32 %v543, %v545
    %v547 = vadd.f32 %v543, %v546
    %vm548 = vweird.f32 %v542
    %vm549 = vweird.f32 %v543
    %vm550 = vmor %vm548, %vm549
    %v551 = vsel %vm550, %v543, %v547
    %v552 = vand.u32 2147483647, %v542
    %vm553 = vcmp.eq.f32.partialorder %v552, 8.507059e+37
    %v554 = vand.u32 %v542, 2147483648
    %v555 = vor.u32 1.1754944e-38, %v554
    %v556 = vsel %vm553, %v555, %v551
    %v557 = vmul.f32 1.0, %v556
    %v558 = vtanh.pop %v518
    %v559 = vxor.u32 %v519, 2147483648
    %v560 = vmul.f32 %v559, 1.442695
    %v561 = vpow.pop %v560
    %v562 = vadd.f32 %v561, 1.0
    %v563 = vrcp.pop %v562
    %v564 = vmul.f32 %v562, %v563
    %v565 = vsub.f32 1.0, %v564
    %v566 = vmul.f32 %v563, %v565
    %v567 = vadd.f32 %v563, %v566
    %vm568 = vweird.f32 %v562
    %vm569 = vweird.f32 %v563
    %vm570 = vmor %vm568, %vm569
    %v571 = vsel %vm570, %v563, %v567
    %v572 = vand.u32 2147483647, %v562
    %vm573 = vcmp.eq.f32.partialorder %v572, 8.507059e+37
    %v574 = vand.u32 %v562, 2147483648
    %v575 = vor.u32 1.1754944e-38, %v574
    %v576 = vsel %vm573, %v575, %v571
    %v577 = vmul.f32 1.0, %v576
    %v578 = vmul.f32 %v557, 0.0
    %v579 = vmul.f32 %v538, %v558
    %v580 = vadd.f32 %v578, %v579
    %v581 = vtanh.pop %v580
    %v582 = vmul.f32 %v577, %v581
    %v583 = vld [vmem:[#allocation2] sm:$0xf0]
    %v584 = vld [vmem:[#allocation2 + $0x8] sm:$0xf0]
    %v585 = vld [vmem:[#allocation2 + $0x10] sm:$0xf0]
    %v586 = vld [vmem:[#allocation2 + $0x18] sm:$0xf0]
    %587 = vmatpush.msra.mxu0 %v432
    %588 = vmatpush.msra.mxu0 %v428
    %589 = vmatpush.msra.mxu0 %v424
    %590 = vmatpush.msra.mxu0 %v420
    %591 = vmatpush.msra.mxu0 %v416
    %592 = vmatpush.msra.mxu0 %v412
    %593 = vmatpush.msra.mxu0 %v408
    %594 = vmatpush.msra.mxu0 %v404
    %595 = vmatpush.msra.mxu0 %v400
    %596 = vmatpush.msra.mxu0 %v396
    %597 = vmatpush.msra.mxu0 %v392
    %598 = vmatpush.msra.mxu0 %v388
    %599 = vmatpush.msra.mxu0 %v384
    %600 = vmatpush.msra.mxu0 %v380
    %601 = vmatpush.msra.mxu0 %v376
    %602 = vmatpush.msra.mxu0 %v372
    %603 = vmatmul.f32.gmra.mxu0 %v582
    %v604 = vpop.f32.mrf.mxu0
    %v605 = vadd.f32 0.0, %v604
    %606 = vdwg.mxu0
    %607 = vmatpush.msra.mxu0 %v433
    %608 = vmatpush.msra.mxu0 %v429
    %609 = vmatpush.msra.mxu0 %v425
    %610 = vmatpush.msra.mxu0 %v421
    %611 = vmatpush.msra.mxu0 %v417
    %612 = vmatpush.msra.mxu0 %v413
    %613 = vmatpush.msra.mxu0 %v409
    %614 = vmatpush.msra.mxu0 %v405
    %615 = vmatpush.msra.mxu0 %v401
    %616 = vmatpush.msra.mxu0 %v397
    %617 = vmatpush.msra.mxu0 %v393
    %618 = vmatpush.msra.mxu0 %v389
    %619 = vmatpush.msra.mxu0 %v385
    %620 = vmatpush.msra.mxu0 %v381
    %621 = vmatpush.msra.mxu0 %v377
    %622 = vmatpush.msra.mxu0 %v373
    %623 = vmatmul.f32.gmra.mxu0 %v582
    %v624 = vpop.f32.mrf.mxu0
    %v625 = vadd.f32 0.0, %v624
    %626 = vdwg.mxu0
    %627 = vmatpush.msra.mxu0 %v434
    %628 = vmatpush.msra.mxu0 %v430
    %629 = vmatpush.msra.mxu0 %v426
    %630 = vmatpush.msra.mxu0 %v422
    %631 = vmatpush.msra.mxu0 %v418
    %632 = vmatpush.msra.mxu0 %v414
    %633 = vmatpush.msra.mxu0 %v410
    %634 = vmatpush.msra.mxu0 %v406
    %635 = vmatpush.msra.mxu0 %v402
    %636 = vmatpush.msra.mxu0 %v398
    %637 = vmatpush.msra.mxu0 %v394
    %638 = vmatpush.msra.mxu0 %v390
    %639 = vmatpush.msra.mxu0 %v386
    %640 = vmatpush.msra.mxu0 %v382
    %641 = vmatpush.msra.mxu0 %v378
    %642 = vmatpush.msra.mxu0 %v374
    %643 = vmatmul.f32.gmra.mxu0 %v582
    %v644 = vpop.f32.mrf.mxu0
    %v645 = vadd.f32 0.0, %v644
    %646 = vdwg.mxu0
    %647 = vmatpush.msra.mxu0 %v435
    %648 = vmatpush.msra.mxu0 %v431
    %649 = vmatpush.msra.mxu0 %v427
    %650 = vmatpush.msra.mxu0 %v423
    %651 = vmatpush.msra.mxu0 %v419
    %652 = vmatpush.msra.mxu0 %v415
    %653 = vmatpush.msra.mxu0 %v411
    %654 = vmatpush.msra.mxu0 %v407
    %655 = vmatpush.msra.mxu0 %v403
    %656 = vmatpush.msra.mxu0 %v399
    %657 = vmatpush.msra.mxu0 %v395
    %658 = vmatpush.msra.mxu0 %v391
    %659 = vmatpush.msra.mxu0 %v387
    %660 = vmatpush.msra.mxu0 %v383
    %661 = vmatpush.msra.mxu0 %v379
    %662 = vmatpush.msra.mxu0 %v375
    %663 = vmatmul.f32.gmra.mxu0 %v582
    %v664 = vpop.f32.mrf.mxu0
    %v665 = vadd.f32 0.0, %v664
    %666 = vdwg.mxu0
    %v671 = vrot.slane %v605, 4
    %v672 = vrot.slane %v625, 4
    %v673 = vrot.slane %v645, 4
    %v674 = vrot.slane %v665, 4
    %v679 = vadd.f32 %v583, %v671
    %v680 = vadd.f32 %v584, %v672
    %v681 = vadd.f32 %v585, %v673
    %v682 = vadd.f32 %v586, %v674
    %v683 = vxor.u32 %v679, 2147483648
    %v684 = vmul.f32 %v683, 1.442695
    %v685 = vpow.pop %v684
    %v686 = vadd.f32 %v685, 1.0
    %v687 = vrcp.pop %v686
    %v688 = vmul.f32 %v686, %v687
    %v689 = vsub.f32 1.0, %v688
    %v690 = vmul.f32 %v687, %v689
    %v691 = vadd.f32 %v687, %v690
    %vm692 = vweird.f32 %v686
    %vm693 = vweird.f32 %v687
    %vm694 = vmor %vm692, %vm693
    %v695 = vsel %vm694, %v687, %v691
    %v696 = vand.u32 2147483647, %v686
    %vm697 = vcmp.eq.f32.partialorder %v696, 8.507059e+37
    %v698 = vand.u32 %v686, 2147483648
    %v699 = vor.u32 1.1754944e-38, %v698
    %v700 = vsel %vm697, %v699, %v695
    %v701 = vmul.f32 1.0, %v700
    %v702 = vxor.u32 %v680, 2147483648
    %v703 = vmul.f32 %v702, 1.442695
    %v704 = vpow.pop %v703
    %v705 = vadd.f32 %v704, 1.0
    %v706 = vrcp.pop %v705
    %v707 = vmul.f32 %v705, %v706
    %v708 = vsub.f32 1.0, %v707
    %v709 = vmul.f32 %v706, %v708
    %v710 = vadd.f32 %v706, %v709
    %vm711 = vweird.f32 %v705
    %vm712 = vweird.f32 %v706
    %vm713 = vmor %vm711, %vm712
    %v714 = vsel %vm713, %v706, %v710
    %v715 = vand.u32 2147483647, %v705
    %vm716 = vcmp.eq.f32.partialorder %v715, 8.507059e+37
    %v717 = vand.u32 %v705, 2147483648
    %v718 = vor.u32 1.1754944e-38, %v717
    %v719 = vsel %vm716, %v718, %v714
    %v720 = vmul.f32 1.0, %v719
    %v721 = vtanh.pop %v681
    %v722 = vxor.u32 %v682, 2147483648
    %v723 = vmul.f32 %v722, 1.442695
    %v724 = vpow.pop %v723
    %v725 = vadd.f32 %v724, 1.0
    %v726 = vrcp.pop %v725
    %v727 = vmul.f32 %v725, %v726
    %v728 = vsub.f32 1.0, %v727
    %v729 = vmul.f32 %v726, %v728
    %v730 = vadd.f32 %v726, %v729
    %vm731 = vweird.f32 %v725
    %vm732 = vweird.f32 %v726
    %vm733 = vmor %vm731, %vm732
    %v734 = vsel %vm733, %v726, %v730
    %v735 = vand.u32 2147483647, %v725
    %vm736 = vcmp.eq.f32.partialorder %v735, 8.507059e+37
    %v737 = vand.u32 %v725, 2147483648
    %v738 = vor.u32 1.1754944e-38, %v737
    %v739 = vsel %vm736, %v738, %v734
    %v740 = vmul.f32 1.0, %v739
    %v742 = vrot.slane %v580, 4
    %v744 = vmul.f32 %v720, %v742
    %v745 = vmul.f32 %v701, %v721
    %v746 = vadd.f32 %v744, %v745
    %v747 = vtanh.pop %v746
    %v748 = vmul.f32 %v740, %v747
    %v749 = vld [vmem:[#allocation2 + $0x20] sm:$0xf]
    %v750 = vld [vmem:[#allocation2 + $0x28] sm:$0xf]
    %v751 = vld [vmem:[#allocation2 + $0x30] sm:$0xf]
    %v752 = vld [vmem:[#allocation2 + $0x38] sm:$0xf]
    %v754 = vrot.slane %v748, 4
    %756 = vmatpush.msra.mxu0 %v432
    %757 = vmatpush.msra.mxu0 %v428
    %758 = vmatpush.msra.mxu0 %v424
    %759 = vmatpush.msra.mxu0 %v420
    %760 = vmatpush.msra.mxu0 %v416
    %761 = vmatpush.msra.mxu0 %v412
    %762 = vmatpush.msra.mxu0 %v408
    %763 = vmatpush.msra.mxu0 %v404
    %764 = vmatpush.msra.mxu0 %v400
    %765 = vmatpush.msra.mxu0 %v396
    %766 = vmatpush.msra.mxu0 %v392
    %767 = vmatpush.msra.mxu0 %v388
    %768 = vmatpush.msra.mxu0 %v384
    %769 = vmatpush.msra.mxu0 %v380
    %770 = vmatpush.msra.mxu0 %v376
    %771 = vmatpush.msra.mxu0 %v372
    %772 = vmatmul.f32.gmra.mxu0 %v754
    %v773 = vpop.f32.mrf.mxu0
    %v774 = vadd.f32 0.0, %v773
    %775 = vdwg.mxu0
    %776 = vmatpush.msra.mxu0 %v433
    %777 = vmatpush.msra.mxu0 %v429
    %778 = vmatpush.msra.mxu0 %v425
    %779 = vmatpush.msra.mxu0 %v421
    %780 = vmatpush.msra.mxu0 %v417
    %781 = vmatpush.msra.mxu0 %v413
    %782 = vmatpush.msra.mxu0 %v409
    %783 = vmatpush.msra.mxu0 %v405
    %784 = vmatpush.msra.mxu0 %v401
    %785 = vmatpush.msra.mxu0 %v397
    %786 = vmatpush.msra.mxu0 %v393
    %787 = vmatpush.msra.mxu0 %v389
    %788 = vmatpush.msra.mxu0 %v385
    %789 = vmatpush.msra.mxu0 %v381
    %790 = vmatpush.msra.mxu0 %v377
    %791 = vmatpush.msra.mxu0 %v373
    %792 = vmatmul.f32.gmra.mxu0 %v754
    %v793 = vpop.f32.mrf.mxu0
    %v794 = vadd.f32 0.0, %v793
    %795 = vdwg.mxu0
    %796 = vmatpush.msra.mxu0 %v434
    %797 = vmatpush.msra.mxu0 %v430
    %798 = vmatpush.msra.mxu0 %v426
    %799 = vmatpush.msra.mxu0 %v422
    %800 = vmatpush.msra.mxu0 %v418
    %801 = vmatpush.msra.mxu0 %v414
    %802 = vmatpush.msra.mxu0 %v410
    %803 = vmatpush.msra.mxu0 %v406
    %804 = vmatpush.msra.mxu0 %v402
    %805 = vmatpush.msra.mxu0 %v398
    %806 = vmatpush.msra.mxu0 %v394
    %807 = vmatpush.msra.mxu0 %v390
    %808 = vmatpush.msra.mxu0 %v386
    %809 = vmatpush.msra.mxu0 %v382
    %810 = vmatpush.msra.mxu0 %v378
    %811 = vmatpush.msra.mxu0 %v374
    %812 = vmatmul.f32.gmra.mxu0 %v754
    %v813 = vpop.f32.mrf.mxu0
    %v814 = vadd.f32 0.0, %v813
    %815 = vdwg.mxu0
    %816 = vmatpush.msra.mxu0 %v435
    %817 = vmatpush.msra.mxu0 %v431
    %818 = vmatpush.msra.mxu0 %v427
    %819 = vmatpush.msra.mxu0 %v423
    %820 = vmatpush.msra.mxu0 %v419
    %821 = vmatpush.msra.mxu0 %v415
    %822 = vmatpush.msra.mxu0 %v411
    %823 = vmatpush.msra.mxu0 %v407
    %824 = vmatpush.msra.mxu0 %v403
    %825 = vmatpush.msra.mxu0 %v399
    %826 = vmatpush.msra.mxu0 %v395
    %827 = vmatpush.msra.mxu0 %v391
    %828 = vmatpush.msra.mxu0 %v387
    %829 = vmatpush.msra.mxu0 %v383
    %830 = vmatpush.msra.mxu0 %v379
    %831 = vmatpush.msra.mxu0 %v375
    %832 = vmatmul.f32.gmra.mxu0 %v754
    %v833 = vpop.f32.mrf.mxu0
    %v834 = vadd.f32 0.0, %v833
    %835 = vdwg.mxu0
    %v836 = vadd.f32 %v749, %v774
    %v837 = vadd.f32 %v750, %v794
    %v838 = vadd.f32 %v751, %v814
    %v839 = vadd.f32 %v752, %v834
    %v840 = vxor.u32 %v836, 2147483648
    %v841 = vmul.f32 %v840, 1.442695
    %v842 = vpow.pop %v841
    %v843 = vadd.f32 %v842, 1.0
    %v844 = vrcp.pop %v843
    %v845 = vmul.f32 %v843, %v844
    %v846 = vsub.f32 1.0, %v845
    %v847 = vmul.f32 %v844, %v846
    %v848 = vadd.f32 %v844, %v847
    %vm849 = vweird.f32 %v843
    %vm850 = vweird.f32 %v844
    %vm851 = vmor %vm849, %vm850
    %v852 = vsel %vm851, %v844, %v848
    %v853 = vand.u32 2147483647, %v843
    %vm854 = vcmp.eq.f32.partialorder %v853, 8.507059e+37
    %v855 = vand.u32 %v843, 2147483648
    %v856 = vor.u32 1.1754944e-38, %v855
    %v857 = vsel %vm854, %v856, %v852
    %v858 = vmul.f32 1.0, %v857
    %v859 = vxor.u32 %v837, 2147483648
    %v860 = vmul.f32 %v859, 1.442695
    %v861 = vpow.pop %v860
    %v862 = vadd.f32 %v861, 1.0
    %v863 = vrcp.pop %v862
    %v864 = vmul.f32 %v862, %v863
    %v865 = vsub.f32 1.0, %v864
    %v866 = vmul.f32 %v863, %v865
    %v867 = vadd.f32 %v863, %v866
    %vm868 = vweird.f32 %v862
    %vm869 = vweird.f32 %v863
    %vm870 = vmor %vm868, %vm869
    %v871 = vsel %vm870, %v863, %v867
    %v872 = vand.u32 2147483647, %v862
    %vm873 = vcmp.eq.f32.partialorder %v872, 8.507059e+37
    %v874 = vand.u32 %v862, 2147483648
    %v875 = vor.u32 1.1754944e-38, %v874
    %v876 = vsel %vm873, %v875, %v871
    %v877 = vmul.f32 1.0, %v876
    %v878 = vtanh.pop %v838
    %v879 = vxor.u32 %v839, 2147483648
    %v880 = vmul.f32 %v879, 1.442695
    %v881 = vpow.pop %v880
    %v882 = vadd.f32 %v881, 1.0
    %v883 = vrcp.pop %v882
    %v884 = vmul.f32 %v882, %v883
    %v885 = vsub.f32 1.0, %v884
    %v886 = vmul.f32 %v883, %v885
    %v887 = vadd.f32 %v883, %v886
    %vm888 = vweird.f32 %v882
    %vm889 = vweird.f32 %v883
    %vm890 = vmor %vm888, %vm889
    %v891 = vsel %vm890, %v883, %v887
    %v892 = vand.u32 2147483647, %v882
    %vm893 = vcmp.eq.f32.partialorder %v892, 8.507059e+37
    %v894 = vand.u32 %v882, 2147483648
    %v895 = vor.u32 1.1754944e-38, %v894
    %v896 = vsel %vm893, %v895, %v891
    %v897 = vmul.f32 1.0, %v896
    %v899 = vrot.slane %v746, 4
    %v901 = vmul.f32 %v877, %v899
    %v902 = vmul.f32 %v858, %v878
    %v903 = vadd.f32 %v901, %v902
    %v904 = vtanh.pop %v903
    %v905 = vmul.f32 %v897, %v904
    %v906 = vld [vmem:[#allocation2 + $0x20] sm:$0xf0]
    %v907 = vld [vmem:[#allocation2 + $0x28] sm:$0xf0]
    %v908 = vld [vmem:[#allocation2 + $0x30] sm:$0xf0]
    %v909 = vld [vmem:[#allocation2 + $0x38] sm:$0xf0]
    %910 = vmatpush.msra.mxu0 %v432
    %911 = vmatpush.msra.mxu0 %v428
    %912 = vmatpush.msra.mxu0 %v424
    %913 = vmatpush.msra.mxu0 %v420
    %914 = vmatpush.msra.mxu0 %v416
    %915 = vmatpush.msra.mxu0 %v412
    %916 = vmatpush.msra.mxu0 %v408
    %917 = vmatpush.msra.mxu0 %v404
    %918 = vmatpush.msra.mxu0 %v400
    %919 = vmatpush.msra.mxu0 %v396
    %920 = vmatpush.msra.mxu0 %v392
    %921 = vmatpush.msra.mxu0 %v388
    %922 = vmatpush.msra.mxu0 %v384
    %923 = vmatpush.msra.mxu0 %v380
    %924 = vmatpush.msra.mxu0 %v376
    %925 = vmatpush.msra.mxu0 %v372
    %926 = vmatmul.f32.gmra.mxu0 %v905
    %v927 = vpop.f32.mrf.mxu0
    %v928 = vadd.f32 0.0, %v927
    %929 = vdwg.mxu0
    %930 = vmatpush.msra.mxu0 %v433
    %931 = vmatpush.msra.mxu0 %v429
    %932 = vmatpush.msra.mxu0 %v425
    %933 = vmatpush.msra.mxu0 %v421
    %934 = vmatpush.msra.mxu0 %v417
    %935 = vmatpush.msra.mxu0 %v413
    %936 = vmatpush.msra.mxu0 %v409
    %937 = vmatpush.msra.mxu0 %v405
    %938 = vmatpush.msra.mxu0 %v401
    %939 = vmatpush.msra.mxu0 %v397
    %940 = vmatpush.msra.mxu0 %v393
    %941 = vmatpush.msra.mxu0 %v389
    %942 = vmatpush.msra.mxu0 %v385
    %943 = vmatpush.msra.mxu0 %v381
    %944 = vmatpush.msra.mxu0 %v377
    %945 = vmatpush.msra.mxu0 %v373
    %946 = vmatmul.f32.gmra.mxu0 %v905
    %v947 = vpop.f32.mrf.mxu0
    %v948 = vadd.f32 0.0, %v947
    %949 = vdwg.mxu0
    %950 = vmatpush.msra.mxu0 %v434
    %951 = vmatpush.msra.mxu0 %v430
    %952 = vmatpush.msra.mxu0 %v426
    %953 = vmatpush.msra.mxu0 %v422
    %954 = vmatpush.msra.mxu0 %v418
    %955 = vmatpush.msra.mxu0 %v414
    %956 = vmatpush.msra.mxu0 %v410
    %957 = vmatpush.msra.mxu0 %v406
    %958 = vmatpush.msra.mxu0 %v402
    %959 = vmatpush.msra.mxu0 %v398
    %960 = vmatpush.msra.mxu0 %v394
    %961 = vmatpush.msra.mxu0 %v390
    %962 = vmatpush.msra.mxu0 %v386
    %963 = vmatpush.msra.mxu0 %v382
    %964 = vmatpush.msra.mxu0 %v378
    %965 = vmatpush.msra.mxu0 %v374
    %966 = vmatmul.f32.gmra.mxu0 %v905
    %v967 = vpop.f32.mrf.mxu0
    %v968 = vadd.f32 0.0, %v967
    %969 = vdwg.mxu0
    %970 = vmatpush.msra.mxu0 %v435
    %971 = vmatpush.msra.mxu0 %v431
    %972 = vmatpush.msra.mxu0 %v427
    %973 = vmatpush.msra.mxu0 %v423
    %974 = vmatpush.msra.mxu0 %v419
    %975 = vmatpush.msra.mxu0 %v415
    %976 = vmatpush.msra.mxu0 %v411
    %977 = vmatpush.msra.mxu0 %v407
    %978 = vmatpush.msra.mxu0 %v403
    %979 = vmatpush.msra.mxu0 %v399
    %980 = vmatpush.msra.mxu0 %v395
    %981 = vmatpush.msra.mxu0 %v391
    %982 = vmatpush.msra.mxu0 %v387
    %983 = vmatpush.msra.mxu0 %v383
    %984 = vmatpush.msra.mxu0 %v379
    %985 = vmatpush.msra.mxu0 %v375
    %986 = vmatmul.f32.gmra.mxu0 %v905
    %v987 = vpop.f32.mrf.mxu0
    %v988 = vadd.f32 0.0, %v987
    %989 = vdwg.mxu0
    %v994 = vrot.slane %v928, 4
    %v995 = vrot.slane %v948, 4
    %v996 = vrot.slane %v968, 4
    %v997 = vrot.slane %v988, 4
    %v1002 = vadd.f32 %v906, %v994
    %v1003 = vadd.f32 %v907, %v995
    %v1004 = vadd.f32 %v908, %v996
    %v1005 = vadd.f32 %v909, %v997
    %v1006 = vxor.u32 %v1002, 2147483648
    %v1007 = vmul.f32 %v1006, 1.442695
    %v1008 = vpow.pop %v1007
    %v1009 = vadd.f32 %v1008, 1.0
    %v1010 = vrcp.pop %v1009
    %v1011 = vmul.f32 %v1009, %v1010
    %v1012 = vsub.f32 1.0, %v1011
    %v1013 = vmul.f32 %v1010, %v1012
    %v1014 = vadd.f32 %v1010, %v1013
    %vm1015 = vweird.f32 %v1009
    %vm1016 = vweird.f32 %v1010
    %vm1017 = vmor %vm1015, %vm1016
    %v1018 = vsel %vm1017, %v1010, %v1014
    %v1019 = vand.u32 2147483647, %v1009
    %vm1020 = vcmp.eq.f32.partialorder %v1019, 8.507059e+37
    %v1021 = vand.u32 %v1009, 2147483648
    %v1022 = vor.u32 1.1754944e-38, %v1021
    %v1023 = vsel %vm1020, %v1022, %v1018
    %v1024 = vmul.f32 1.0, %v1023
    %v1025 = vxor.u32 %v1003, 2147483648
    %v1026 = vmul.f32 %v1025, 1.442695
    %v1027 = vpow.pop %v1026
    %v1028 = vadd.f32 %v1027, 1.0
    %v1029 = vrcp.pop %v1028
    %v1030 = vmul.f32 %v1028, %v1029
    %v1031 = vsub.f32 1.0, %v1030
    %v1032 = vmul.f32 %v1029, %v1031
    %v1033 = vadd.f32 %v1029, %v1032
    %vm1034 = vweird.f32 %v1028
    %vm1035 = vweird.f32 %v1029
    %vm1036 = vmor %vm1034, %vm1035
    %v1037 = vsel %vm1036, %v1029, %v1033
    %v1038 = vand.u32 2147483647, %v1028
    %vm1039 = vcmp.eq.f32.partialorder %v1038, 8.507059e+37
    %v1040 = vand.u32 %v1028, 2147483648
    %v1041 = vor.u32 1.1754944e-38, %v1040
    %v1042 = vsel %vm1039, %v1041, %v1037
    %v1043 = vmul.f32 1.0, %v1042
    %v1044 = vtanh.pop %v1004
    %v1045 = vxor.u32 %v1005, 2147483648
    %v1046 = vmul.f32 %v1045, 1.442695
    %v1047 = vpow.pop %v1046
    %v1048 = vadd.f32 %v1047, 1.0
    %v1049 = vrcp.pop %v1048
    %v1050 = vmul.f32 %v1048, %v1049
    %v1051 = vsub.f32 1.0, %v1050
    %v1052 = vmul.f32 %v1049, %v1051
    %v1053 = vadd.f32 %v1049, %v1052
    %vm1054 = vweird.f32 %v1048
    %vm1055 = vweird.f32 %v1049
    %vm1056 = vmor %vm1054, %vm1055
    %v1057 = vsel %vm1056, %v1049, %v1053
    %v1058 = vand.u32 2147483647, %v1048
    %vm1059 = vcmp.eq.f32.partialorder %v1058, 8.507059e+37
    %v1060 = vand.u32 %v1048, 2147483648
    %v1061 = vor.u32 1.1754944e-38, %v1060
    %v1062 = vsel %vm1059, %v1061, %v1057
    %v1063 = vmul.f32 1.0, %v1062
    %v1065 = vrot.slane %v903, 4
    %v1067 = vmul.f32 %v1043, %v1065
    %v1068 = vmul.f32 %v1024, %v1044
    %v1069 = vadd.f32 %v1067, %v1068
    %v1070 = vtanh.pop %v1069
    %v1071 = vmul.f32 %v1063, %v1070
    %v1072 = vld [vmem:[#allocation2 + $0x40] sm:$0xf]
    %v1073 = vld [vmem:[#allocation2 + $0x48] sm:$0xf]
    %v1074 = vld [vmem:[#allocation2 + $0x50] sm:$0xf]
    %v1075 = vld [vmem:[#allocation2 + $0x58] sm:$0xf]
    %v1077 = vrot.slane %v1071, 4
    %1079 = vmatpush.msra.mxu0 %v432
    %1080 = vmatpush.msra.mxu0 %v428
    %1081 = vmatpush.msra.mxu0 %v424
    %1082 = vmatpush.msra.mxu0 %v420
    %1083 = vmatpush.msra.mxu0 %v416
    %1084 = vmatpush.msra.mxu0 %v412
    %1085 = vmatpush.msra.mxu0 %v408
    %1086 = vmatpush.msra.mxu0 %v404
    %1087 = vmatpush.msra.mxu0 %v400
    %1088 = vmatpush.msra.mxu0 %v396
    %1089 = vmatpush.msra.mxu0 %v392
    %1090 = vmatpush.msra.mxu0 %v388
    %1091 = vmatpush.msra.mxu0 %v384
    %1092 = vmatpush.msra.mxu0 %v380
    %1093 = vmatpush.msra.mxu0 %v376
    %1094 = vmatpush.msra.mxu0 %v372
    %1095 = vmatmul.f32.gmra.mxu0 %v1077
    %v1096 = vpop.f32.mrf.mxu0
    %v1097 = vadd.f32 0.0, %v1096
    %1098 = vdwg.mxu0
    %1099 = vmatpush.msra.mxu0 %v433
    %1100 = vmatpush.msra.mxu0 %v429
    %1101 = vmatpush.msra.mxu0 %v425
    %1102 = vmatpush.msra.mxu0 %v421
    %1103 = vmatpush.msra.mxu0 %v417
    %1104 = vmatpush.msra.mxu0 %v413
    %1105 = vmatpush.msra.mxu0 %v409
    %1106 = vmatpush.msra.mxu0 %v405
    %1107 = vmatpush.msra.mxu0 %v401
    %1108 = vmatpush.msra.mxu0 %v397
    %1109 = vmatpush.msra.mxu0 %v393
    %1110 = vmatpush.msra.mxu0 %v389
    %1111 = vmatpush.msra.mxu0 %v385
    %1112 = vmatpush.msra.mxu0 %v381
    %1113 = vmatpush.msra.mxu0 %v377
    %1114 = vmatpush.msra.mxu0 %v373
    %1115 = vmatmul.f32.gmra.mxu0 %v1077
    %v1116 = vpop.f32.mrf.mxu0
    %v1117 = vadd.f32 0.0, %v1116
    %1118 = vdwg.mxu0
    %1119 = vmatpush.msra.mxu0 %v434
    %1120 = vmatpush.msra.mxu0 %v430
    %1121 = vmatpush.msra.mxu0 %v426
    %1122 = vmatpush.msra.mxu0 %v422
    %1123 = vmatpush.msra.mxu0 %v418
    %1124 = vmatpush.msra.mxu0 %v414
    %1125 = vmatpush.msra.mxu0 %v410
    %1126 = vmatpush.msra.mxu0 %v406
    %1127 = vmatpush.msra.mxu0 %v402
    %1128 = vmatpush.msra.mxu0 %v398
    %1129 = vmatpush.msra.mxu0 %v394
    %1130 = vmatpush.msra.mxu0 %v390
    %1131 = vmatpush.msra.mxu0 %v386
    %1132 = vmatpush.msra.mxu0 %v382
    %1133 = vmatpush.msra.mxu0 %v378
    %1134 = vmatpush.msra.mxu0 %v374
    %1135 = vmatmul.f32.gmra.mxu0 %v1077
    %v1136 = vpop.f32.mrf.mxu0
    %v1137 = vadd.f32 0.0, %v1136
    %1138 = vdwg.mxu0
    %1139 = vmatpush.msra.mxu0 %v435
    %1140 = vmatpush.msra.mxu0 %v431
    %1141 = vmatpush.msra.mxu0 %v427
    %1142 = vmatpush.msra.mxu0 %v423
    %1143 = vmatpush.msra.mxu0 %v419
    %1144 = vmatpush.msra.mxu0 %v415
    %1145 = vmatpush.msra.mxu0 %v411
    %1146 = vmatpush.msra.mxu0 %v407
    %1147 = vmatpush.msra.mxu0 %v403
    %1148 = vmatpush.msra.mxu0 %v399
    %1149 = vmatpush.msra.mxu0 %v395
    %1150 = vmatpush.msra.mxu0 %v391
    %1151 = vmatpush.msra.mxu0 %v387
    %1152 = vmatpush.msra.mxu0 %v383
    %1153 = vmatpush.msra.mxu0 %v379
    %1154 = vmatpush.msra.mxu0 %v375
    %1155 = vmatmul.f32.gmra.mxu0 %v1077
    %v1156 = vpop.f32.mrf.mxu0
    %v1157 = vadd.f32 0.0, %v1156
    %1158 = vdwg.mxu0
    %v1159 = vadd.f32 %v1072, %v1097
    %v1160 = vadd.f32 %v1073, %v1117
    %v1161 = vadd.f32 %v1074, %v1137
    %v1162 = vadd.f32 %v1075, %v1157
    %v1163 = vxor.u32 %v1159, 2147483648
    %v1164 = vmul.f32 %v1163, 1.442695
    %v1165 = vpow.pop %v1164
    %v1166 = vadd.f32 %v1165, 1.0
    %v1167 = vrcp.pop %v1166
    %v1168 = vmul.f32 %v1166, %v1167
    %v1169 = vsub.f32 1.0, %v1168
    %v1170 = vmul.f32 %v1167, %v1169
    %v1171 = vadd.f32 %v1167, %v1170
    %vm1172 = vweird.f32 %v1166
    %vm1173 = vweird.f32 %v1167
    %vm1174 = vmor %vm1172, %vm1173
    %v1175 = vsel %vm1174, %v1167, %v1171
    %v1176 = vand.u32 2147483647, %v1166
    %vm1177 = vcmp.eq.f32.partialorder %v1176, 8.507059e+37
    %v1178 = vand.u32 %v1166, 2147483648
    %v1179 = vor.u32 1.1754944e-38, %v1178
    %v1180 = vsel %vm1177, %v1179, %v1175
    %v1181 = vmul.f32 1.0, %v1180
    %v1182 = vxor.u32 %v1160, 2147483648
    %v1183 = vmul.f32 %v1182, 1.442695
    %v1184 = vpow.pop %v1183
    %v1185 = vadd.f32 %v1184, 1.0
    %v1186 = vrcp.pop %v1185
    %v1187 = vmul.f32 %v1185, %v1186
    %v1188 = vsub.f32 1.0, %v1187
    %v1189 = vmul.f32 %v1186, %v1188
    %v1190 = vadd.f32 %v1186, %v1189
    %vm1191 = vweird.f32 %v1185
    %vm1192 = vweird.f32 %v1186
    %vm1193 = vmor %vm1191, %vm1192
    %v1194 = vsel %vm1193, %v1186, %v1190
    %v1195 = vand.u32 2147483647, %v1185
    %vm1196 = vcmp.eq.f32.partialorder %v1195, 8.507059e+37
    %v1197 = vand.u32 %v1185, 2147483648
    %v1198 = vor.u32 1.1754944e-38, %v1197
    %v1199 = vsel %vm1196, %v1198, %v1194
    %v1200 = vmul.f32 1.0, %v1199
    %v1201 = vtanh.pop %v1161
    %v1202 = vxor.u32 %v1162, 2147483648
    %v1203 = vmul.f32 %v1202, 1.442695
    %v1204 = vpow.pop %v1203
    %v1205 = vadd.f32 %v1204, 1.0
    %v1206 = vrcp.pop %v1205
    %v1207 = vmul.f32 %v1205, %v1206
    %v1208 = vsub.f32 1.0, %v1207
    %v1209 = vmul.f32 %v1206, %v1208
    %v1210 = vadd.f32 %v1206, %v1209
    %vm1211 = vweird.f32 %v1205
    %vm1212 = vweird.f32 %v1206
    %vm1213 = vmor %vm1211, %vm1212
    %v1214 = vsel %vm1213, %v1206, %v1210
    %v1215 = vand.u32 2147483647, %v1205
    %vm1216 = vcmp.eq.f32.partialorder %v1215, 8.507059e+37
    %v1217 = vand.u32 %v1205, 2147483648
    %v1218 = vor.u32 1.1754944e-38, %v1217
    %v1219 = vsel %vm1216, %v1218, %v1214
    %v1220 = vmul.f32 1.0, %v1219
    %v1222 = vrot.slane %v1069, 4
    %v1224 = vmul.f32 %v1200, %v1222
    %v1225 = vmul.f32 %v1181, %v1201
    %v1226 = vadd.f32 %v1224, %v1225
    %v1227 = vtanh.pop %v1226
    %v1228 = vmul.f32 %v1220, %v1227
    %v1229 = vld [vmem:[#allocation2 + $0x40] sm:$0xf0]
    %v1230 = vld [vmem:[#allocation2 + $0x48] sm:$0xf0]
    %v1231 = vld [vmem:[#allocation2 + $0x50] sm:$0xf0]
    %v1232 = vld [vmem:[#allocation2 + $0x58] sm:$0xf0]
    %1233 = vmatpush.msra.mxu0 %v432
    %1234 = vmatpush.msra.mxu0 %v428
    %1235 = vmatpush.msra.mxu0 %v424
    %1236 = vmatpush.msra.mxu0 %v420
    %1237 = vmatpush.msra.mxu0 %v416
    %1238 = vmatpush.msra.mxu0 %v412
    %1239 = vmatpush.msra.mxu0 %v408
    %1240 = vmatpush.msra.mxu0 %v404
    %1241 = vmatpush.msra.mxu0 %v400
    %1242 = vmatpush.msra.mxu0 %v396
    %1243 = vmatpush.msra.mxu0 %v392
    %1244 = vmatpush.msra.mxu0 %v388
    %1245 = vmatpush.msra.mxu0 %v384
    %1246 = vmatpush.msra.mxu0 %v380
    %1247 = vmatpush.msra.mxu0 %v376
    %1248 = vmatpush.msra.mxu0 %v372
    %1249 = vmatmul.f32.gmra.mxu0 %v1228
    %v1250 = vpop.f32.mrf.mxu0
    %v1251 = vadd.f32 0.0, %v1250
    %1252 = vdwg.mxu0
    %1253 = vmatpush.msra.mxu0 %v433
    %1254 = vmatpush.msra.mxu0 %v429
    %1255 = vmatpush.msra.mxu0 %v425
    %1256 = vmatpush.msra.mxu0 %v421
    %1257 = vmatpush.msra.mxu0 %v417
    %1258 = vmatpush.msra.mxu0 %v413
    %1259 = vmatpush.msra.mxu0 %v409
    %1260 = vmatpush.msra.mxu0 %v405
    %1261 = vmatpush.msra.mxu0 %v401
    %1262 = vmatpush.msra.mxu0 %v397
    %1263 = vmatpush.msra.mxu0 %v393
    %1264 = vmatpush.msra.mxu0 %v389
    %1265 = vmatpush.msra.mxu0 %v385
    %1266 = vmatpush.msra.mxu0 %v381
    %1267 = vmatpush.msra.mxu0 %v377
    %1268 = vmatpush.msra.mxu0 %v373
    %1269 = vmatmul.f32.gmra.mxu0 %v1228
    %v1270 = vpop.f32.mrf.mxu0
    %v1271 = vadd.f32 0.0, %v1270
    %1272 = vdwg.mxu0
    %1273 = vmatpush.msra.mxu0 %v434
    %1274 = vmatpush.msra.mxu0 %v430
    %1275 = vmatpush.msra.mxu0 %v426
    %1276 = vmatpush.msra.mxu0 %v422
    %1277 = vmatpush.msra.mxu0 %v418
    %1278 = vmatpush.msra.mxu0 %v414
    %1279 = vmatpush.msra.mxu0 %v410
    %1280 = vmatpush.msra.mxu0 %v406
    %1281 = vmatpush.msra.mxu0 %v402
    %1282 = vmatpush.msra.mxu0 %v398
    %1283 = vmatpush.msra.mxu0 %v394
    %1284 = vmatpush.msra.mxu0 %v390
    %1285 = vmatpush.msra.mxu0 %v386
    %1286 = vmatpush.msra.mxu0 %v382
    %1287 = vmatpush.msra.mxu0 %v378
    %1288 = vmatpush.msra.mxu0 %v374
    %1289 = vmatmul.f32.gmra.mxu0 %v1228
    %v1290 = vpop.f32.mrf.mxu0
    %v1291 = vadd.f32 0.0, %v1290
    %1292 = vdwg.mxu0
    %1293 = vmatpush.msra.mxu0 %v435
    %1294 = vmatpush.msra.mxu0 %v431
    %1295 = vmatpush.msra.mxu0 %v427
    %1296 = vmatpush.msra.mxu0 %v423
    %1297 = vmatpush.msra.mxu0 %v419
    %1298 = vmatpush.msra.mxu0 %v415
    %1299 = vmatpush.msra.mxu0 %v411
    %1300 = vmatpush.msra.mxu0 %v407
    %1301 = vmatpush.msra.mxu0 %v403
    %1302 = vmatpush.msra.mxu0 %v399
    %1303 = vmatpush.msra.mxu0 %v395
    %1304 = vmatpush.msra.mxu0 %v391
    %1305 = vmatpush.msra.mxu0 %v387
    %1306 = vmatpush.msra.mxu0 %v383
    %1307 = vmatpush.msra.mxu0 %v379
    %1308 = vmatpush.msra.mxu0 %v375
    %1309 = vmatmul.f32.gmra.mxu0 %v1228
    %v1310 = vpop.f32.mrf.mxu0
    %v1311 = vadd.f32 0.0, %v1310
    %1312 = vdwg.mxu0
    %v1317 = vrot.slane %v1251, 4
    %v1318 = vrot.slane %v1271, 4
    %v1319 = vrot.slane %v1291, 4
    %v1320 = vrot.slane %v1311, 4
    %v1325 = vadd.f32 %v1229, %v1317
    %v1326 = vadd.f32 %v1230, %v1318
    %v1327 = vadd.f32 %v1231, %v1319
    %v1328 = vadd.f32 %v1232, %v1320
    %v1329 = vxor.u32 %v1325, 2147483648
    %v1330 = vmul.f32 %v1329, 1.442695
    %v1331 = vpow.pop %v1330
    %v1332 = vadd.f32 %v1331, 1.0
    %v1333 = vrcp.pop %v1332
    %v1334 = vmul.f32 %v1332, %v1333
    %v1335 = vsub.f32 1.0, %v1334
    %v1336 = vmul.f32 %v1333, %v1335
    %v1337 = vadd.f32 %v1333, %v1336
    %vm1338 = vweird.f32 %v1332
    %vm1339 = vweird.f32 %v1333
    %vm1340 = vmor %vm1338, %vm1339
    %v1341 = vsel %vm1340, %v1333, %v1337
    %v1342 = vand.u32 2147483647, %v1332
    %vm1343 = vcmp.eq.f32.partialorder %v1342, 8.507059e+37
    %v1344 = vand.u32 %v1332, 2147483648
    %v1345 = vor.u32 1.1754944e-38, %v1344
    %v1346 = vsel %vm1343, %v1345, %v1341
    %v1347 = vmul.f32 1.0, %v1346
    %v1348 = vxor.u32 %v1326, 2147483648
    %v1349 = vmul.f32 %v1348, 1.442695
    %v1350 = vpow.pop %v1349
    %v1351 = vadd.f32 %v1350, 1.0
    %v1352 = vrcp.pop %v1351
    %v1353 = vmul.f32 %v1351, %v1352
    %v1354 = vsub.f32 1.0, %v1353
    %v1355 = vmul.f32 %v1352, %v1354
    %v1356 = vadd.f32 %v1352, %v1355
    %vm1357 = vweird.f32 %v1351
    %vm1358 = vweird.f32 %v1352
    %vm1359 = vmor %vm1357, %vm1358
    %v1360 = vsel %vm1359, %v1352, %v1356
    %v1361 = vand.u32 2147483647, %v1351
    %vm1362 = vcmp.eq.f32.partialorder %v1361, 8.507059e+37
    %v1363 = vand.u32 %v1351, 2147483648
    %v1364 = vor.u32 1.1754944e-38, %v1363
    %v1365 = vsel %vm1362, %v1364, %v1360
    %v1366 = vmul.f32 1.0, %v1365
    %v1367 = vtanh.pop %v1327
    %v1368 = vxor.u32 %v1328, 2147483648
    %v1369 = vmul.f32 %v1368, 1.442695
    %v1370 = vpow.pop %v1369
    %v1371 = vadd.f32 %v1370, 1.0
    %v1372 = vrcp.pop %v1371
    %v1373 = vmul.f32 %v1371, %v1372
    %v1374 = vsub.f32 1.0, %v1373
    %v1375 = vmul.f32 %v1372, %v1374
    %v1376 = vadd.f32 %v1372, %v1375
    %vm1377 = vweird.f32 %v1371
    %vm1378 = vweird.f32 %v1372
    %vm1379 = vmor %vm1377, %vm1378
    %v1380 = vsel %vm1379, %v1372, %v1376
    %v1381 = vand.u32 2147483647, %v1371
    %vm1382 = vcmp.eq.f32.partialorder %v1381, 8.507059e+37
    %v1383 = vand.u32 %v1371, 2147483648
    %v1384 = vor.u32 1.1754944e-38, %v1383
    %v1385 = vsel %vm1382, %v1384, %v1380
    %v1386 = vmul.f32 1.0, %v1385
    %v1388 = vrot.slane %v1226, 4
    %v1390 = vmul.f32 %v1366, %v1388
    %v1391 = vmul.f32 %v1347, %v1367
    %v1392 = vadd.f32 %v1390, %v1391
    %v1393 = vtanh.pop %v1392
    %v1394 = vmul.f32 %v1386, %v1393
    %v1395 = vld [vmem:[#allocation2 + $0x60] sm:$0xf]
    %v1396 = vld [vmem:[#allocation2 + $0x68] sm:$0xf]
    %v1397 = vld [vmem:[#allocation2 + $0x70] sm:$0xf]
    %v1398 = vld [vmem:[#allocation2 + $0x78] sm:$0xf]
    %v1400 = vrot.slane %v1394, 4
    %1402 = vmatpush.msra.mxu0 %v432
    %1403 = vmatpush.msra.mxu0 %v428
    %1404 = vmatpush.msra.mxu0 %v424
    %1405 = vmatpush.msra.mxu0 %v420
    %1406 = vmatpush.msra.mxu0 %v416
    %1407 = vmatpush.msra.mxu0 %v412
    %1408 = vmatpush.msra.mxu0 %v408
    %1409 = vmatpush.msra.mxu0 %v404
    %1410 = vmatpush.msra.mxu0 %v400
    %1411 = vmatpush.msra.mxu0 %v396
    %1412 = vmatpush.msra.mxu0 %v392
    %1413 = vmatpush.msra.mxu0 %v388
    %1414 = vmatpush.msra.mxu0 %v384
    %1415 = vmatpush.msra.mxu0 %v380
    %1416 = vmatpush.msra.mxu0 %v376
    %1417 = vmatpush.msra.mxu0 %v372
    %1418 = vmatmul.f32.gmra.mxu0 %v1400
    %v1419 = vpop.f32.mrf.mxu0
    %v1420 = vadd.f32 0.0, %v1419
    %1421 = vdwg.mxu0
    %1422 = vmatpush.msra.mxu0 %v433
    %1423 = vmatpush.msra.mxu0 %v429
    %1424 = vmatpush.msra.mxu0 %v425
    %1425 = vmatpush.msra.mxu0 %v421
    %1426 = vmatpush.msra.mxu0 %v417
    %1427 = vmatpush.msra.mxu0 %v413
    %1428 = vmatpush.msra.mxu0 %v409
    %1429 = vmatpush.msra.mxu0 %v405
    %1430 = vmatpush.msra.mxu0 %v401
    %1431 = vmatpush.msra.mxu0 %v397
    %1432 = vmatpush.msra.mxu0 %v393
    %1433 = vmatpush.msra.mxu0 %v389
    %1434 = vmatpush.msra.mxu0 %v385
    %1435 = vmatpush.msra.mxu0 %v381
    %1436 = vmatpush.msra.mxu0 %v377
    %1437 = vmatpush.msra.mxu0 %v373
    %1438 = vmatmul.f32.gmra.mxu0 %v1400
    %v1439 = vpop.f32.mrf.mxu0
    %v1440 = vadd.f32 0.0, %v1439
    %1441 = vdwg.mxu0
    %1442 = vmatpush.msra.mxu0 %v434
    %1443 = vmatpush.msra.mxu0 %v430
    %1444 = vmatpush.msra.mxu0 %v426
    %1445 = vmatpush.msra.mxu0 %v422
    %1446 = vmatpush.msra.mxu0 %v418
    %1447 = vmatpush.msra.mxu0 %v414
    %1448 = vmatpush.msra.mxu0 %v410
    %1449 = vmatpush.msra.mxu0 %v406
    %1450 = vmatpush.msra.mxu0 %v402
    %1451 = vmatpush.msra.mxu0 %v398
    %1452 = vmatpush.msra.mxu0 %v394
    %1453 = vmatpush.msra.mxu0 %v390
    %1454 = vmatpush.msra.mxu0 %v386
    %1455 = vmatpush.msra.mxu0 %v382
    %1456 = vmatpush.msra.mxu0 %v378
    %1457 = vmatpush.msra.mxu0 %v374
    %1458 = vmatmul.f32.gmra.mxu0 %v1400
    %v1459 = vpop.f32.mrf.mxu0
    %v1460 = vadd.f32 0.0, %v1459
    %1461 = vdwg.mxu0
    %1462 = vmatpush.msra.mxu0 %v435
    %1463 = vmatpush.msra.mxu0 %v431
    %1464 = vmatpush.msra.mxu0 %v427
    %1465 = vmatpush.msra.mxu0 %v423
    %1466 = vmatpush.msra.mxu0 %v419
    %1467 = vmatpush.msra.mxu0 %v415
    %1468 = vmatpush.msra.mxu0 %v411
    %1469 = vmatpush.msra.mxu0 %v407
    %1470 = vmatpush.msra.mxu0 %v403
    %1471 = vmatpush.msra.mxu0 %v399
    %1472 = vmatpush.msra.mxu0 %v395
    %1473 = vmatpush.msra.mxu0 %v391
    %1474 = vmatpush.msra.mxu0 %v387
    %1475 = vmatpush.msra.mxu0 %v383
    %1476 = vmatpush.msra.mxu0 %v379
    %1477 = vmatpush.msra.mxu0 %v375
    %1478 = vmatmul.f32.gmra.mxu0 %v1400
    %v1479 = vpop.f32.mrf.mxu0
    %v1480 = vadd.f32 0.0, %v1479
    %1481 = vdwg.mxu0
    %v1482 = vadd.f32 %v1395, %v1420
    %v1483 = vadd.f32 %v1396, %v1440
    %v1484 = vadd.f32 %v1397, %v1460
    %v1485 = vadd.f32 %v1398, %v1480
    %v1486 = vxor.u32 %v1482, 2147483648
    %v1487 = vmul.f32 %v1486, 1.442695
    %v1488 = vpow.pop %v1487
    %v1489 = vadd.f32 %v1488, 1.0
    %v1490 = vrcp.pop %v1489
    %v1491 = vmul.f32 %v1489, %v1490
    %v1492 = vsub.f32 1.0, %v1491
    %v1493 = vmul.f32 %v1490, %v1492
    %v1494 = vadd.f32 %v1490, %v1493
    %vm1495 = vweird.f32 %v1489
    %vm1496 = vweird.f32 %v1490
    %vm1497 = vmor %vm1495, %vm1496
    %v1498 = vsel %vm1497, %v1490, %v1494
    %v1499 = vand.u32 2147483647, %v1489
    %vm1500 = vcmp.eq.f32.partialorder %v1499, 8.507059e+37
    %v1501 = vand.u32 %v1489, 2147483648
    %v1502 = vor.u32 1.1754944e-38, %v1501
    %v1503 = vsel %vm1500, %v1502, %v1498
    %v1504 = vmul.f32 1.0, %v1503
    %v1505 = vxor.u32 %v1483, 2147483648
    %v1506 = vmul.f32 %v1505, 1.442695
    %v1507 = vpow.pop %v1506
    %v1508 = vadd.f32 %v1507, 1.0
    %v1509 = vrcp.pop %v1508
    %v1510 = vmul.f32 %v1508, %v1509
    %v1511 = vsub.f32 1.0, %v1510
    %v1512 = vmul.f32 %v1509, %v1511
    %v1513 = vadd.f32 %v1509, %v1512
    %vm1514 = vweird.f32 %v1508
    %vm1515 = vweird.f32 %v1509
    %vm1516 = vmor %vm1514, %vm1515
    %v1517 = vsel %vm1516, %v1509, %v1513
    %v1518 = vand.u32 2147483647, %v1508
    %vm1519 = vcmp.eq.f32.partialorder %v1518, 8.507059e+37
    %v1520 = vand.u32 %v1508, 2147483648
    %v1521 = vor.u32 1.1754944e-38, %v1520
    %v1522 = vsel %vm1519, %v1521, %v1517
    %v1523 = vmul.f32 1.0, %v1522
    %v1524 = vtanh.pop %v1484
    %v1525 = vxor.u32 %v1485, 2147483648
    %v1526 = vmul.f32 %v1525, 1.442695
    %v1527 = vpow.pop %v1526
    %v1528 = vadd.f32 %v1527, 1.0
    %v1529 = vrcp.pop %v1528
    %v1530 = vmul.f32 %v1528, %v1529
    %v1531 = vsub.f32 1.0, %v1530
    %v1532 = vmul.f32 %v1529, %v1531
    %v1533 = vadd.f32 %v1529, %v1532
    %vm1534 = vweird.f32 %v1528
    %vm1535 = vweird.f32 %v1529
    %vm1536 = vmor %vm1534, %vm1535
    %v1537 = vsel %vm1536, %v1529, %v1533
    %v1538 = vand.u32 2147483647, %v1528
    %vm1539 = vcmp.eq.f32.partialorder %v1538, 8.507059e+37
    %v1540 = vand.u32 %v1528, 2147483648
    %v1541 = vor.u32 1.1754944e-38, %v1540
    %v1542 = vsel %vm1539, %v1541, %v1537
    %v1543 = vmul.f32 1.0, %v1542
    %v1545 = vrot.slane %v1392, 4
    %v1547 = vmul.f32 %v1523, %v1545
    %v1548 = vmul.f32 %v1504, %v1524
    %v1549 = vadd.f32 %v1547, %v1548
    %v1550 = vtanh.pop %v1549
    %v1551 = vmul.f32 %v1543, %v1550
    %v1552 = vld [vmem:[#allocation2 + $0x60] sm:$0xf0]
    %v1553 = vld [vmem:[#allocation2 + $0x68] sm:$0xf0]
    %v1554 = vld [vmem:[#allocation2 + $0x70] sm:$0xf0]
    %v1555 = vld [vmem:[#allocation2 + $0x78] sm:$0xf0]
    %1556 = vmatpush.msra.mxu0 %v432
    %1557 = vmatpush.msra.mxu0 %v428
    %1558 = vmatpush.msra.mxu0 %v424
    %1559 = vmatpush.msra.mxu0 %v420
    %1560 = vmatpush.msra.mxu0 %v416
    %1561 = vmatpush.msra.mxu0 %v412
    %1562 = vmatpush.msra.mxu0 %v408
    %1563 = vmatpush.msra.mxu0 %v404
    %1564 = vmatpush.msra.mxu0 %v400
    %1565 = vmatpush.msra.mxu0 %v396
    %1566 = vmatpush.msra.mxu0 %v392
    %1567 = vmatpush.msra.mxu0 %v388
    %1568 = vmatpush.msra.mxu0 %v384
    %1569 = vmatpush.msra.mxu0 %v380
    %1570 = vmatpush.msra.mxu0 %v376
    %1571 = vmatpush.msra.mxu0 %v372
    %1572 = vmatmul.f32.gmra.mxu0 %v1551
    %v1573 = vpop.f32.mrf.mxu0
    %v1574 = vadd.f32 0.0, %v1573
    %1575 = vdwg.mxu0
    %1576 = vmatpush.msra.mxu0 %v433
    %1577 = vmatpush.msra.mxu0 %v429
    %1578 = vmatpush.msra.mxu0 %v425
    %1579 = vmatpush.msra.mxu0 %v421
    %1580 = vmatpush.msra.mxu0 %v417
    %1581 = vmatpush.msra.mxu0 %v413
    %1582 = vmatpush.msra.mxu0 %v409
    %1583 = vmatpush.msra.mxu0 %v405
    %1584 = vmatpush.msra.mxu0 %v401
    %1585 = vmatpush.msra.mxu0 %v397
    %1586 = vmatpush.msra.mxu0 %v393
    %1587 = vmatpush.msra.mxu0 %v389
    %1588 = vmatpush.msra.mxu0 %v385
    %1589 = vmatpush.msra.mxu0 %v381
    %1590 = vmatpush.msra.mxu0 %v377
    %1591 = vmatpush.msra.mxu0 %v373
    %1592 = vmatmul.f32.gmra.mxu0 %v1551
    %v1593 = vpop.f32.mrf.mxu0
    %v1594 = vadd.f32 0.0, %v1593
    %1595 = vdwg.mxu0
    %1596 = vmatpush.msra.mxu0 %v434
    %1597 = vmatpush.msra.mxu0 %v430
    %1598 = vmatpush.msra.mxu0 %v426
    %1599 = vmatpush.msra.mxu0 %v422
    %1600 = vmatpush.msra.mxu0 %v418
    %1601 = vmatpush.msra.mxu0 %v414
    %1602 = vmatpush.msra.mxu0 %v410
    %1603 = vmatpush.msra.mxu0 %v406
    %1604 = vmatpush.msra.mxu0 %v402
    %1605 = vmatpush.msra.mxu0 %v398
    %1606 = vmatpush.msra.mxu0 %v394
    %1607 = vmatpush.msra.mxu0 %v390
    %1608 = vmatpush.msra.mxu0 %v386
    %1609 = vmatpush.msra.mxu0 %v382
    %1610 = vmatpush.msra.mxu0 %v378
    %1611 = vmatpush.msra.mxu0 %v374
    %1612 = vmatmul.f32.gmra.mxu0 %v1551
    %v1613 = vpop.f32.mrf.mxu0
    %v1614 = vadd.f32 0.0, %v1613
    %1615 = vdwg.mxu0
    %1616 = vmatpush.msra.mxu0 %v435
    %1617 = vmatpush.msra.mxu0 %v431
    %1618 = vmatpush.msra.mxu0 %v427
    %1619 = vmatpush.msra.mxu0 %v423
    %1620 = vmatpush.msra.mxu0 %v419
    %1621 = vmatpush.msra.mxu0 %v415
    %1622 = vmatpush.msra.mxu0 %v411
    %1623 = vmatpush.msra.mxu0 %v407
    %1624 = vmatpush.msra.mxu0 %v403
    %1625 = vmatpush.msra.mxu0 %v399
    %1626 = vmatpush.msra.mxu0 %v395
    %1627 = vmatpush.msra.mxu0 %v391
    %1628 = vmatpush.msra.mxu0 %v387
    %1629 = vmatpush.msra.mxu0 %v383
    %1630 = vmatpush.msra.mxu0 %v379
    %1631 = vmatpush.msra.mxu0 %v375
    %1632 = vmatmul.f32.gmra.mxu0 %v1551
    %v1633 = vpop.f32.mrf.mxu0
    %v1634 = vadd.f32 0.0, %v1633
    %1635 = vdwg.mxu0
    %v1640 = vrot.slane %v1574, 4
    %v1641 = vrot.slane %v1594, 4
    %v1642 = vrot.slane %v1614, 4
    %v1643 = vrot.slane %v1634, 4
    %v1648 = vadd.f32 %v1552, %v1640
    %v1649 = vadd.f32 %v1553, %v1641
    %v1650 = vadd.f32 %v1554, %v1642
    %v1651 = vadd.f32 %v1555, %v1643
    %v1652 = vxor.u32 %v1648, 2147483648
    %v1653 = vmul.f32 %v1652, 1.442695
    %v1654 = vpow.pop %v1653
    %v1655 = vadd.f32 %v1654, 1.0
    %v1656 = vrcp.pop %v1655
    %v1657 = vmul.f32 %v1655, %v1656
    %v1658 = vsub.f32 1.0, %v1657
    %v1659 = vmul.f32 %v1656, %v1658
    %v1660 = vadd.f32 %v1656, %v1659
    %vm1661 = vweird.f32 %v1655
    %vm1662 = vweird.f32 %v1656
    %vm1663 = vmor %vm1661, %vm1662
    %v1664 = vsel %vm1663, %v1656, %v1660
    %v1665 = vand.u32 2147483647, %v1655
    %vm1666 = vcmp.eq.f32.partialorder %v1665, 8.507059e+37
    %v1667 = vand.u32 %v1655, 2147483648
    %v1668 = vor.u32 1.1754944e-38, %v1667
    %v1669 = vsel %vm1666, %v1668, %v1664
    %v1670 = vmul.f32 1.0, %v1669
    %v1671 = vxor.u32 %v1649, 2147483648
    %v1672 = vmul.f32 %v1671, 1.442695
    %v1673 = vpow.pop %v1672
    %v1674 = vadd.f32 %v1673, 1.0
    %v1675 = vrcp.pop %v1674
    %v1676 = vmul.f32 %v1674, %v1675
    %v1677 = vsub.f32 1.0, %v1676
    %v1678 = vmul.f32 %v1675, %v1677
    %v1679 = vadd.f32 %v1675, %v1678
    %vm1680 = vweird.f32 %v1674
    %vm1681 = vweird.f32 %v1675
    %vm1682 = vmor %vm1680, %vm1681
    %v1683 = vsel %vm1682, %v1675, %v1679
    %v1684 = vand.u32 2147483647, %v1674
    %vm1685 = vcmp.eq.f32.partialorder %v1684, 8.507059e+37
    %v1686 = vand.u32 %v1674, 2147483648
    %v1687 = vor.u32 1.1754944e-38, %v1686
    %v1688 = vsel %vm1685, %v1687, %v1683
    %v1689 = vmul.f32 1.0, %v1688
    %v1690 = vtanh.pop %v1650
    %v1691 = vxor.u32 %v1651, 2147483648
    %v1692 = vmul.f32 %v1691, 1.442695
    %v1693 = vpow.pop %v1692
    %v1694 = vadd.f32 %v1693, 1.0
    %v1695 = vrcp.pop %v1694
    %v1696 = vmul.f32 %v1694, %v1695
    %v1697 = vsub.f32 1.0, %v1696
    %v1698 = vmul.f32 %v1695, %v1697
    %v1699 = vadd.f32 %v1695, %v1698
    %vm1700 = vweird.f32 %v1694
    %vm1701 = vweird.f32 %v1695
    %vm1702 = vmor %vm1700, %vm1701
    %v1703 = vsel %vm1702, %v1695, %v1699
    %v1704 = vand.u32 2147483647, %v1694
    %vm1705 = vcmp.eq.f32.partialorder %v1704, 8.507059e+37
    %v1706 = vand.u32 %v1694, 2147483648
    %v1707 = vor.u32 1.1754944e-38, %v1706
    %v1708 = vsel %vm1705, %v1707, %v1703
    %v1709 = vmul.f32 1.0, %v1708
    %v1711 = vrot.slane %v1549, 4
    %v1713 = vmul.f32 %v1689, %v1711
    %v1714 = vmul.f32 %v1670, %v1690
    %v1715 = vadd.f32 %v1713, %v1714
    %v1716 = vtanh.pop %v1715
    %v1717 = vmul.f32 %v1709, %v1716
    %v1718 = vlaneseq
    %v1719 = vand.u32 %v1718, 127
    %vm1720 = vcmp.lt.s32.totalorder %v1719, 64
    %v1722 = vrot.slane %v1717, 4
    %v1724 = vsel %vm1720, %v582, %v1722
    %1725 = vst [vmem:[#allocation3] sm:$0xf] %v1724
    %v1727 = vrot.slane %v1551, 4
    %v1729 = vsel %vm1720, %v748, %v1727
    %1730 = vst [vmem:[#allocation3] sm:$0xf0] %v1729
    %v1731 = vsel %vm1720, %v905, %v1400
    %1732 = vst [vmem:[#allocation3 + $0x8] sm:$0xf] %v1731
    %v1734 = vrot.slane %v1228, 4
    %v1736 = vsel %vm1720, %v1071, %v1734
    %1737 = vst [vmem:[#allocation3 + $0x8] sm:$0xf0] %v1736
    %v1738 = vsel %vm1720, %v1228, %v1077
    %1739 = vst [vmem:[#allocation3 + $0x10] sm:$0xf] %v1738
    %v1741 = vrot.slane %v905, 4
    %v1743 = vsel %vm1720, %v1394, %v1741
    %1744 = vst [vmem:[#allocation3 + $0x10] sm:$0xf0] %v1743
    %v1745 = vsel %vm1720, %v1551, %v754
    %1746 = vst [vmem:[#allocation3 + $0x18] sm:$0xf] %v1745
    %v1748 = vrot.slane %v582, 4
    %v1750 = vsel %vm1720, %v1717, %v1748
    %1751 = vst [vmem:[#allocation3 + $0x18] sm:$0xf0] %v1750
    %v1752 = vld [vmem:[#allocation3] sm:$0xff]
    %v1753 = vld [vmem:[#allocation3 + $0x8] sm:$0xff]
    %v1754 = vld [vmem:[#allocation3 + $0x10] sm:$0xff]
    %v1755 = vld [vmem:[#allocation3 + $0x18] sm:$0xff]
    %v1756 = vld [vmem:[#allocation10] sm:$0xff]
    %v1757 = vld [vmem:[#allocation10 + $0x8] sm:$0xff]
    %v1758 = vld [vmem:[#allocation10 + $0x10] sm:$0xff]
    %v1759 = vld [vmem:[#allocation10 + $0x18] sm:$0xff]
    %v1760 = vld [vmem:[#allocation10 + $0x20] sm:$0xff]
    %v1761 = vld [vmem:[#allocation10 + $0x28] sm:$0xff]
    %v1762 = vld [vmem:[#allocation10 + $0x30] sm:$0xff]
    %v1763 = vld [vmem:[#allocation10 + $0x38] sm:$0xff]
    %v1764 = vld [vmem:[#allocation10 + $0x40] sm:$0xff]
    %v1765 = vld [vmem:[#allocation10 + $0x48] sm:$0xff]
    %v1766 = vld [vmem:[#allocation10 + $0x50] sm:$0xff]
    %v1767 = vld [vmem:[#allocation10 + $0x58] sm:$0xff]
    %v1768 = vld [vmem:[#allocation10 + $0x60] sm:$0xff]
    %v1769 = vld [vmem:[#allocation10 + $0x68] sm:$0xff]
    %v1770 = vld [vmem:[#allocation10 + $0x70] sm:$0xff]
    %v1771 = vld [vmem:[#allocation10 + $0x78] sm:$0xff]
    %1772 = vmatpush.msra.mxu0 %v1771
    %1773 = vmatpush.msra.mxu0 %v1770
    %1774 = vmatpush.msra.mxu0 %v1769
    %1775 = vmatpush.msra.mxu0 %v1768
    %1776 = vmatpush.msra.mxu0 %v1767
    %1777 = vmatpush.msra.mxu0 %v1766
    %1778 = vmatpush.msra.mxu0 %v1765
    %1779 = vmatpush.msra.mxu0 %v1764
    %1780 = vmatpush.msra.mxu0 %v1763
    %1781 = vmatpush.msra.mxu0 %v1762
    %1782 = vmatpush.msra.mxu0 %v1761
    %1783 = vmatpush.msra.mxu0 %v1760
    %1784 = vmatpush.msra.mxu0 %v1759
    %1785 = vmatpush.msra.mxu0 %v1758
    %1786 = vmatpush.msra.mxu0 %v1757
    %1787 = vmatpush.msra.mxu0 %v1756
    %1788 = vmatmul.f32.gmra.mxu0 %v1752
    %v1789 = vpop.f32.mrf.mxu0
    %v1790 = vadd.f32 %v125, %v1789
    %1791 = vmatmul.f32.gmra.mxu0 %v1753
    %v1792 = vpop.f32.mrf.mxu0
    %v1793 = vadd.f32 %v125, %v1792
    %1794 = vmatmul.f32.gmra.mxu0 %v1754
    %v1795 = vpop.f32.mrf.mxu0
    %v1796 = vadd.f32 %v125, %v1795
    %1797 = vmatmul.f32.gmra.mxu0 %v1755
    %v1798 = vpop.f32.mrf.mxu0
    %v1799 = vadd.f32 %v125, %v1798
    %1800 = vdwg.mxu0
    %v1801 = vmax.f32 %v1790, 0.0
    %v1802 = vmax.f32 %v1793, 0.0
    %v1803 = vmax.f32 %v1796, 0.0
    %v1804 = vmax.f32 %v1799, 0.0
    %v1805 = vld [vmem:[#allocation12] sm:$0xff]
    %v1806 = vld [vmem:[#allocation12 + $0x8] sm:$0xff]
    %v1807 = vld [vmem:[#allocation12 + $0x10] sm:$0xff]
    %v1808 = vld [vmem:[#allocation12 + $0x18] sm:$0xff]
    %v1809 = vld [vmem:[#allocation12 + $0x20] sm:$0xff]
    %v1810 = vld [vmem:[#allocation12 + $0x28] sm:$0xff]
    %v1811 = vld [vmem:[#allocation12 + $0x30] sm:$0xff]
    %v1812 = vld [vmem:[#allocation12 + $0x38] sm:$0xff]
    %v1813 = vld [vmem:[#allocation12 + $0x40] sm:$0xff]
    %v1814 = vld [vmem:[#allocation12 + $0x48] sm:$0xff]
    %v1815 = vld [vmem:[#allocation12 + $0x50] sm:$0xff]
    %v1816 = vld [vmem:[#allocation12 + $0x58] sm:$0xff]
    %v1817 = vld [vmem:[#allocation12 + $0x60] sm:$0xff]
    %v1818 = vld [vmem:[#allocation12 + $0x68] sm:$0xff]
    %v1819 = vld [vmem:[#allocation12 + $0x70] sm:$0xff]
    %v1820 = vld [vmem:[#allocation12 + $0x78] sm:$0xff]
    %1821 = vmatpush.msra.mxu0 %v1820
    %1822 = vmatpush.msra.mxu0 %v1819
    %1823 = vmatpush.msra.mxu0 %v1818
    %1824 = vmatpush.msra.mxu0 %v1817
    %1825 = vmatpush.msra.mxu0 %v1816
    %1826 = vmatpush.msra.mxu0 %v1815
    %1827 = vmatpush.msra.mxu0 %v1814
    %1828 = vmatpush.msra.mxu0 %v1813
    %1829 = vmatpush.msra.mxu0 %v1812
    %1830 = vmatpush.msra.mxu0 %v1811
    %1831 = vmatpush.msra.mxu0 %v1810
    %1832 = vmatpush.msra.mxu0 %v1809
    %1833 = vmatpush.msra.mxu0 %v1808
    %1834 = vmatpush.msra.mxu0 %v1807
    %1835 = vmatpush.msra.mxu0 %v1806
    %1836 = vmatpush.msra.mxu0 %v1805
    %1837 = vmatmul.f32.gmra.mxu0 %v1801
    %v1838 = vpop.f32.mrf.mxu0
    %v1839 = vadd.f32 0.0, %v1838
    %1840 = vmatmul.f32.gmra.mxu0 %v1802
    %v1841 = vpop.f32.mrf.mxu0
    %v1842 = vadd.f32 0.0, %v1841
    %1843 = vmatmul.f32.gmra.mxu0 %v1803
    %v1844 = vpop.f32.mrf.mxu0
    %v1845 = vadd.f32 0.0, %v1844
    %1846 = vmatmul.f32.gmra.mxu0 %v1804
    %v1847 = vpop.f32.mrf.mxu0
    %v1848 = vadd.f32 0.0, %v1847
    %1849 = vdwg.mxu0
    %v1850 = vadd.f32 %v1839, %v126
    %v1851 = vadd.f32 %v1842, %v126
    %v1852 = vadd.f32 %v1845, %v126
    %v1853 = vadd.f32 %v1848, %v126
    %v1855 = vrot.slane %v1850, 4
    %v1857 = vmax.f32 %v1850, %v1855
    %v1858 = vmax.f32 %v1857, %v1851
    %v1860 = vrot.slane %v1851, 4
    %v1862 = vmax.f32 %v1858, %v1860
    %v1863 = vmax.f32 %v1862, %v1852
    %v1865 = vrot.slane %v1852, 4
    %v1867 = vmax.f32 %v1863, %v1865
    %v1868 = vmax.f32 %v1867, %v1853
    %v1870 = vrot.slane %v1853, 4
    %v1872 = vmax.f32 %v1868, %v1870
    %v1873 = vsub.f32 %v1850, %v1872
    %v1874 = vmul.f32 %v1873, 1.442695
    %v1875 = vpow.pop %v1874
    %v1877 = vrot.slane %v1872, 4
    %v1879 = vsub.f32 %v1850, %v1877
    %v1880 = vmul.f32 %v1879, 1.442695
    %v1881 = vpow.pop %v1880
    %v1882 = vsub.f32 %v1851, %v1872
    %v1883 = vmul.f32 %v1882, 1.442695
    %v1884 = vpow.pop %v1883
    %v1885 = vsub.f32 %v1851, %v1877
    %v1886 = vmul.f32 %v1885, 1.442695
    %v1887 = vpow.pop %v1886
    %v1888 = vsub.f32 %v1852, %v1872
    %v1889 = vmul.f32 %v1888, 1.442695
    %v1890 = vpow.pop %v1889
    %v1891 = vsub.f32 %v1852, %v1877
    %v1892 = vmul.f32 %v1891, 1.442695
    %v1893 = vpow.pop %v1892
    %v1894 = vsub.f32 %v1853, %v1872
    %v1895 = vmul.f32 %v1894, 1.442695
    %v1896 = vpow.pop %v1895
    %v1897 = vsub.f32 %v1853, %v1877
    %v1898 = vmul.f32 %v1897, 1.442695
    %v1899 = vpow.pop %v1898
    %v1901 = vrot.slane %v1881, 4
    %v1903 = vadd.f32 %v1875, %v1901
    %v1904 = vadd.f32 %v1903, %v1884
    %v1906 = vrot.slane %v1887, 4
    %v1908 = vadd.f32 %v1904, %v1906
    %v1909 = vadd.f32 %v1908, %v1890
    %v1911 = vrot.slane %v1893, 4
    %v1913 = vadd.f32 %v1909, %v1911
    %v1914 = vadd.f32 %v1913, %v1896
    %v1916 = vrot.slane %v1899, 4
    %v1918 = vadd.f32 %v1914, %v1916
    %v1919 = vrcp.pop %v1918
    %v1920 = vmul.f32 %v1918, %v1919
    %v1921 = vsub.f32 1.0, %v1920
    %v1922 = vmul.f32 %v1919, %v1921
    %v1923 = vadd.f32 %v1919, %v1922
    %vm1924 = vweird.f32 %v1918
    %vm1925 = vweird.f32 %v1919
    %vm1926 = vmor %vm1924, %vm1925
    %v1927 = vsel %vm1926, %v1919, %v1923
    %v1928 = vand.u32 2147483647, %v1918
    %vm1929 = vcmp.eq.f32.partialorder %v1928, 8.507059e+37
    %v1930 = vand.u32 %v1918, 2147483648
    %v1931 = vor.u32 1.1754944e-38, %v1930
    %v1932 = vsel %vm1929, %v1931, %v1927
    %v1933 = vmul.f32 1.0, %v1932
    %v1934 = vmul.f32 %v1875, %v1933
    %1936 = vset.pattern.permute.xlu0 0
    %1937 = vperm.xlu0 %1936, %v1934
    %v1938 = vpop.permute.xlu0 %1937
    %v1940 = vmul.f32 %v1724, %v1938
    %v1942 = vrot.slane %v1933, 4
    %v1944 = vmul.f32 %v1881, %v1942
    %1946 = vset.pattern.permute.xlu0 0
    %1947 = vperm.xlu0 %1946, %v1944
    %v1948 = vpop.permute.xlu0 %1947
    %v1950 = vmul.f32 %v1729, %v1948
    %v1952 = vrot.slane %v1950, 4
    %v1954 = vadd.f32 %v1940, %v1952
    %v1956 = vrot.slane %v1729, 4
    %v1958 = vadd.f32 %v1724, %v1956
    %v1959 = vmul.f32 %v1884, %v1933
    %1961 = vset.pattern.permute.xlu0 0
    %1962 = vperm.xlu0 %1961, %v1959
    %v1963 = vpop.permute.xlu0 %1962
    %v1965 = vmul.f32 %v1731, %v1963
    %v1966 = vadd.f32 %v1954, %v1965
    %v1967 = vadd.f32 %v1958, %v1731
    %v1968 = vmul.f32 %v1887, %v1942
    %1970 = vset.pattern.permute.xlu0 0
    %1971 = vperm.xlu0 %1970, %v1968
    %v1972 = vpop.permute.xlu0 %1971
    %v1974 = vmul.f32 %v1736, %v1972
    %v1976 = vrot.slane %v1974, 4
    %v1978 = vadd.f32 %v1966, %v1976
    %v1980 = vrot.slane %v1736, 4
    %v1982 = vadd.f32 %v1967, %v1980
    %v1983 = vmul.f32 %v1890, %v1933
    %1985 = vset.pattern.permute.xlu0 0
    %1986 = vperm.xlu0 %1985, %v1983
    %v1987 = vpop.permute.xlu0 %1986
    %v1989 = vmul.f32 %v1738, %v1987
    %v1990 = vadd.f32 %v1978, %v1989
    %v1991 = vadd.f32 %v1982, %v1738
    %v1992 = vmul.f32 %v1893, %v1942
    %1994 = vset.pattern.permute.xlu0 0
    %1995 = vperm.xlu0 %1994, %v1992
    %v1996 = vpop.permute.xlu0 %1995
    %v1998 = vmul.f32 %v1743, %v1996
    %v2000 = vrot.slane %v1998, 4
    %v2002 = vadd.f32 %v1990, %v2000
    %v2004 = vrot.slane %v1743, 4
    %v2006 = vadd.f32 %v1991, %v2004
    %v2007 = vmul.f32 %v1896, %v1933
    %2009 = vset.pattern.permute.xlu0 0
    %2010 = vperm.xlu0 %2009, %v2007
    %v2011 = vpop.permute.xlu0 %2010
    %v2013 = vmul.f32 %v1745, %v2011
    %v2014 = vadd.f32 %v2002, %v2013
    %v2015 = vadd.f32 %v2006, %v1745
    %v2016 = vmul.f32 %v1899, %v1942
    %2018 = vset.pattern.permute.xlu0 0
    %2019 = vperm.xlu0 %2018, %v2016
    %v2020 = vpop.permute.xlu0 %2019
    %v2022 = vmul.f32 %v1750, %v2020
    %v2024 = vrot.slane %v2022, 4
    %v2026 = vadd.f32 %v2014, %v2024
    %v2028 = vrot.slane %v1750, 4
    %v2030 = vadd.f32 %v2015, %v2028
    %v2031 = vld [vmem:[%s6] sm:$0xff]
    %v2032 = vld [vmem:[%s6 + $0x8] sm:$0xff]
    %v2033 = vld [vmem:[%s6 + $0x10] sm:$0xff]
    %v2034 = vld [vmem:[%s6 + $0x18] sm:$0xff]
    %v2035 = vld [vmem:[%s6 + $0x20] sm:$0xff]
    %v2036 = vld [vmem:[%s6 + $0x28] sm:$0xff]
    %v2037 = vld [vmem:[%s6 + $0x30] sm:$0xff]
    %v2038 = vld [vmem:[%s6 + $0x38] sm:$0xff]
    %v2039 = vld [vmem:[%s6 + $0x40] sm:$0xff]
    %v2040 = vld [vmem:[%s6 + $0x48] sm:$0xff]
    %v2041 = vld [vmem:[%s6 + $0x50] sm:$0xff]
    %v2042 = vld [vmem:[%s6 + $0x58] sm:$0xff]
    %v2043 = vld [vmem:[%s6 + $0x60] sm:$0xff]
    %v2044 = vld [vmem:[%s6 + $0x68] sm:$0xff]
    %v2045 = vld [vmem:[%s6 + $0x70] sm:$0xff]
    %v2046 = vld [vmem:[%s6 + $0x78] sm:$0xff]
    %v2047 = vld [vmem:[%s6 + $0x80] sm:$0xff]
    %v2048 = vld [vmem:[%s6 + $0x88] sm:$0xff]
    %v2049 = vld [vmem:[%s6 + $0x90] sm:$0xff]
    %v2050 = vld [vmem:[%s6 + $0x98] sm:$0xff]
    %v2051 = vld [vmem:[%s6 + $0xa0] sm:$0xff]
    %v2052 = vld [vmem:[%s6 + $0xa8] sm:$0xff]
    %v2053 = vld [vmem:[%s6 + $0xb0] sm:$0xff]
    %v2054 = vld [vmem:[%s6 + $0xb8] sm:$0xff]
    %v2055 = vld [vmem:[%s6 + $0xc0] sm:$0xff]
    %v2056 = vld [vmem:[%s6 + $0xc8] sm:$0xff]
    %v2057 = vld [vmem:[%s6 + $0xd0] sm:$0xff]
    %v2058 = vld [vmem:[%s6 + $0xd8] sm:$0xff]
    %v2059 = vld [vmem:[%s6 + $0xe0] sm:$0xff]
    %v2060 = vld [vmem:[%s6 + $0xe8] sm:$0xff]
    %v2061 = vld [vmem:[%s6 + $0xf0] sm:$0xff]
    %v2062 = vld [vmem:[%s6 + $0xf8] sm:$0xff]
    %2063 = vmatpush.msra.mxu0 %v2046
    %2064 = vmatpush.msra.mxu0 %v2045
    %2065 = vmatpush.msra.mxu0 %v2044
    %2066 = vmatpush.msra.mxu0 %v2043
    %2067 = vmatpush.msra.mxu0 %v2042
    %2068 = vmatpush.msra.mxu0 %v2041
    %2069 = vmatpush.msra.mxu0 %v2040
    %2070 = vmatpush.msra.mxu0 %v2039
    %2071 = vmatpush.msra.mxu0 %v2038
    %2072 = vmatpush.msra.mxu0 %v2037
    %2073 = vmatpush.msra.mxu0 %v2036
    %2074 = vmatpush.msra.mxu0 %v2035
    %2075 = vmatpush.msra.mxu0 %v2034
    %2076 = vmatpush.msra.mxu0 %v2033
    %2077 = vmatpush.msra.mxu0 %v2032
    %2078 = vmatpush.msra.mxu0 %v2031
    %2079 = vmatmul.f32.gmra.mxu0 %v2026
    %v2080 = vpop.f32.mrf.mxu0
    %v2081 = vadd.f32 %v127, %v2080
    %2082 = vdwg.mxu0
    %2083 = vmatpush.msra.mxu0 %v2062
    %2084 = vmatpush.msra.mxu0 %v2061
    %2085 = vmatpush.msra.mxu0 %v2060
    %2086 = vmatpush.msra.mxu0 %v2059
    %2087 = vmatpush.msra.mxu0 %v2058
    %2088 = vmatpush.msra.mxu0 %v2057
    %2089 = vmatpush.msra.mxu0 %v2056
    %2090 = vmatpush.msra.mxu0 %v2055
    %2091 = vmatpush.msra.mxu0 %v2054
    %2092 = vmatpush.msra.mxu0 %v2053
    %2093 = vmatpush.msra.mxu0 %v2052
    %2094 = vmatpush.msra.mxu0 %v2051
    %2095 = vmatpush.msra.mxu0 %v2050
    %2096 = vmatpush.msra.mxu0 %v2049
    %2097 = vmatpush.msra.mxu0 %v2048
    %2098 = vmatpush.msra.mxu0 %v2047
    %2099 = vmatmul.f32.gmra.mxu0 %v2030
    %v2100 = vpop.f32.mrf.mxu0
    %v2101 = vadd.f32 %v2081, %v2100
    %2102 = vdwg.mxu0
    %vm2103 = vcmask 60416
    %2104 = vst.msk [vmem:[#allocation15] sm:$0xf] %vm2103, %v2101
    // Predicated region
    $region58: #{tpu_custom_call.1} parent=1 // pred_check
      _
    $region59: #{tpu_custom_call.1} parent=1 // pred_check_branch
      %2106 = sbr.rel (0) target = $region61
    $region60: #{tpu_custom_call.1} parent=1 // pred_region
      %2108 = vsyncadd [#allocation6], 0
      %s2110 = sshll.u32 [#allocation15], 4
      %s2111 = int_to_ptr.vmem [resolvable:$true] %s2110
      %s2112 = sshll.u32 %s8, 4
      %s2113 = int_to_ptr.hbm [resolvable:$true] %s2112
      %2115 = dma.vmem_to_hbm [thread:$0]  %s2111, 64, %s2113, [#allocation6]
    $region61: #{tpu_custom_call.1} parent=1 // pred_fallthru
      _
    // Predicated region
    $region62: #{tpu_custom_call.1} parent=1 // pred_check
      _
    $region63: #{tpu_custom_call.1} parent=1 // pred_check_branch
      %2117 = sbr.rel (0) target = $region65
    $region64: #{tpu_custom_call.1} parent=1 // pred_region
      %2119 = dma.done [#allocation6], 64
    $region65: #{tpu_custom_call.1} parent=1 // pred_fallthru
      _
    %2120 = vsyncpa [#allocation5], 1
    %2121 = vsyncpa [#allocation8], 1
    %2122 = vsyncpa [#allocation11], 1
    %2123 = vsyncpa [#allocation14], 1
    %2124 = vsyncpa [#allocation6], 1

</llo_original>
